<compile_context>
chip_gen: v6e
topology: v6e:2x2x1
jax: 0.10.0
libtpu: 0.0.40
codegen_flags: <defaults>
</compile_context>

<pallas_src>
import functools

import jax
import jax.numpy as jnp
from jax.experimental import pallas as pl
from jax.experimental.pallas import tpu as pltpu

LN_EPS = 1e-5  # PyTorch nn.LayerNorm default eps


def _round_up(n, m):
    return ((n + m - 1) // m) * m


def _pad_axis(a, axis, target):
    pad = target - a.shape[axis]
    if pad <= 0:
        return a
    cfg = [(0, 0)] * a.ndim
    cfg[axis] = (0, pad)
    return jnp.pad(a, cfg)


def _pad_last(a, target):
    return _pad_axis(a, a.ndim - 1, target)


def _layernorm(x, gamma, beta):
    # Single traversal: var = E[x^2] - E[x]^2 (clamped), both reductions
    # independent so the XLU can overlap them.
    mean = jnp.mean(x, axis=-1, keepdims=True)
    ex2 = jnp.mean(x * x, axis=-1, keepdims=True)
    var = jnp.maximum(ex2 - mean * mean, 0.0)
    inv = jax.lax.rsqrt(var + LN_EPS)
    return (x - mean) * inv * gamma + beta


def _mlp_kernel(n_blocks, kb, h_dim, out_p,
                x_ref, w0_ref, sq_ref, vec_ref, out_ref):
    """One grid step == KB windows' full MLP forward in VMEM.

    x_ref   : (B_P, IN_P)                 bf16 (shared across all steps)
    w0_ref  : (KB, IN_P, h)               bf16
    sq_ref  : (KB, n_blocks+2, h, WMAX)   bf16  -- [block W's..., W1, Wf]
    vec_ref : (KB, 2*n_blocks+4, WMAX)    f32   -- packed LN params + biases
    out_ref : (KB, B_P, OUT_P)            f32
    """
    x = x_ref[...]  # bf16, loaded once, reused by every window

    for j in range(kb):                      # static unroll over windows
        vec = vec_ref[j]                     # (NROWS, WMAX) f32
        g0 = vec[0:1, :h_dim]
        b0 = vec[1:2, :h_dim]
        b1 = vec[2 + 2 * n_blocks:3 + 2 * n_blocks, :h_dim]
        bf_ = vec[3 + 2 * n_blocks:4 + 2 * n_blocks, :out_p]

        # lin0: Linear(in_dim, h, bias=False) -> LayerNorm -> ReLU -> Dropout(id)
        h = jnp.dot(x, w0_ref[j], preferred_element_type=jnp.float32)
        h = _layernorm(h, g0, b0)
        h = jnp.maximum(h, 0.0)

        # residual MLP blocks (static unroll; n_blocks is a Python constant)
        residual = h
        for i in range(n_blocks):
            g_i = vec[2 + i:3 + i, :h_dim]
            b_i = vec[2 + n_blocks + i:3 + n_blocks + i, :h_dim]
            w_i = sq_ref[j, i][:, :h_dim]
            y = jnp.dot(h.astype(jnp.bfloat16), w_i,
                        preferred_element_type=jnp.float32)
            y = _layernorm(y, g_i, b_i)
            y = jnp.maximum(y, 0.0)
            h = y + residual
            residual = h

        # linear1 (with bias)
        w1 = sq_ref[j, n_blocks][:, :h_dim]
        h = jnp.dot(h.astype(jnp.bfloat16), w1,
                    preferred_element_type=jnp.float32) + b1

        # final_mlp: Linear(h, out_dim) with bias (out_dim zero-padded to OUT_P)
        wf = sq_ref[j, n_blocks + 1][:, :out_p]
        out = jnp.dot(h.astype(jnp.bfloat16), wf,
                      preferred_element_type=jnp.float32) + bf_
        out_ref[j] = out.astype(out_ref.dtype)


def base_disentangle_forward(x, params, *, n_blocks, kb_request=8):
    """Returns a list of window_k arrays of shape (B, out_dim) (f32)."""
    w0, g0, b0, wblk, gblk, bblk, w1, b1, wf, bf = params
    K, in_dim, h = w0.shape
    out_dim = wf.shape[2]
    B = x.shape[0]
    assert h % 128 == 0, "hidden dim must be a multiple of 128 (MXU/lane tiling)"

    IN_P = _round_up(in_dim, 128)     # lane-dense x / W0 loads
    OUT_P = _round_up(out_dim, 128)   # lane-dense output stores (full vst)
    B_P = _round_up(B, 16)            # bf16 sublane packing (16 rows / vreg)
    WMAX = max(h, OUT_P)              # common lane width of packed slabs
    NROWS = 2 * n_blocks + 4          # packed vector-slab rows

    # ---- choose KB (windows per grid step) under a VMEM budget --------------
    per_window_bytes = ((IN_P * h + (n_blocks + 2) * h * WMAX) * 2   # bf16 weights
                        + NROWS * WMAX * 4                            # f32 vec slab
                        + B_P * OUT_P * 4)                            # f32 out block
    vmem_budget = 20 * 1024 * 1024    # per buffer set; x2 double-buffered < v7x 64 MiB
    kb = max(1, min(kb_request, K, vmem_budget // max(per_window_bytes, 1)))
    KP = _round_up(K, kb)             # pad K so the grid divides evenly
    # NOTE: on v7x (2 TensorCores) a single grid step can't be split across
    # cores; if K is small/odd megacore gives <2x - acceptable per review.

    # ---- bf16 matmul operands (zero padding keeps the math exact) -----------
    x_p = _pad_last(_pad_axis(x, 0, B_P), IN_P).astype(jnp.bfloat16)       # (B_P, IN_P)
    w0_p = _pad_axis(w0, 1, IN_P).astype(jnp.bfloat16)                     # (K, IN_P, h)

    # pack [block W's..., W1, Wf] into one bf16 slab per window
    sq = jnp.concatenate(
        [
            _pad_last(wblk, WMAX),                 # (K, nb, h, WMAX)
            _pad_last(w1, WMAX)[:, None],          # (K, 1,  h, WMAX)
            _pad_last(wf, WMAX)[:, None],          # (K, 1,  h, WMAX)
        ],
        axis=1,
    ).astype(jnp.bfloat16)                                                  # (K, nb+2, h, WMAX)

    # ---- pack all small per-window vectors into one f32 slab ----------------
    vec = jnp.concatenate(
        [
            _pad_last(g0, WMAX),       # row 0
            _pad_last(b0, WMAX),       # row 1
            _pad_last(gblk, WMAX),     # rows 2 .. 2+nb-1
            _pad_last(bblk, WMAX),     # rows 2+nb .. 2+2nb-1
            _pad_last(b1, WMAX),       # row 2+2nb
            _pad_last(bf, WMAX),       # row 3+2nb
        ],
        axis=1,
    ).astype(jnp.float32)                                                   # (K, NROWS, WMAX)

    # pad the window axis to KP (padded windows compute zeros and are sliced off)
    w0_p = _pad_axis(w0_p, 0, KP)
    sq = _pad_axis(sq, 0, KP)
    vec = _pad_axis(vec, 0, KP)

    # ---- VMEM limit: raise only when the double-buffered working set needs it
    block_bytes = (kb * IN_P * h * 2
                   + kb * (n_blocks + 2) * h * WMAX * 2
                   + kb * NROWS * WMAX * 4
                   + kb * B_P * OUT_P * 4
                   + B_P * IN_P * 2)
    vmem_need = 2 * block_bytes + 4 * B_P * h * 4     # + f32 intermediates
    vmem_limit = None
    if vmem_need > 12 * 1024 * 1024:
        vmem_limit = int(min(64 * 1024 * 1024, vmem_need * 3 // 2))

    kernel = functools.partial(_mlp_kernel, n_blocks, kb, h, OUT_P)

    out = pl.pallas_call(
        kernel,
        out_shape=jax.ShapeDtypeStruct((KP, B_P, OUT_P), jnp.float32),
        grid_spec=pltpu.PrefetchScalarGridSpec(
            num_scalar_prefetch=0,
            grid=(KP // kb,),
            in_specs=[
                pl.BlockSpec((B_P, IN_P), lambda g: (0, 0)),                # x (shared, fetched once)
                pl.BlockSpec((kb, IN_P, h), lambda g: (g, 0, 0)),           # W0
                pl.BlockSpec((kb, n_blocks + 2, h, WMAX),
                             lambda g: (g, 0, 0, 0)),                       # packed square weights
                pl.BlockSpec((kb, NROWS, WMAX), lambda g: (g, 0, 0)),       # packed vectors
            ],
            out_specs=pl.BlockSpec((kb, B_P, OUT_P), lambda g: (g, 0, 0)),
        ),
        compiler_params=pltpu.CompilerParams(
            # Windows are independent -> legal "parallel" (v7x megacore sharding).
            dimension_semantics=("parallel",),
            vmem_limit_bytes=vmem_limit,
        ),
    )(x_p, w0_p, sq, vec)

    return [out[i, :B, :out_dim] for i in range(K)]


# ---------------- pure-JAX reference (mirrors eval-mode PyTorch forward) -----
def _mlp_reference(x, w0, g0, b0, wblk, gblk, bblk, w1, b1, wf, bf, n_blocks):
    def ln(v, g, b):
        m = v.mean(-1, keepdims=True)
        var = ((v - m) ** 2).mean(-1, keepdims=True)
        return (v - m) / jnp.sqrt(var + LN_EPS) * g + b

    def mm(a, w):  # same bf16-in / f32-accumulate contract as the kernel
        return jnp.dot(a.astype(jnp.bfloat16), w.astype(jnp.bfloat16),
                       preferred_element_type=jnp.float32)

    h = jnp.maximum(ln(mm(x, w0), g0, b0), 0.0)
    res = h
    for i in range(n_blocks):
        y = jnp.maximum(ln(mm(h, wblk[i]), gblk[i], bblk[i]), 0.0)
        h = y + res
        res = h
    h = mm(h, w1) + b1
    return mm(h, wf) + bf


if __name__ == "__main__":
    # Small shapes consistent with the module (indim, hidden, outdim scaled down).
    B, IN_DIM, HIDDEN, OUT_DIM = 8, 64, 128, 32
    WINDOW_K, N_BLOCKS = 3, 2

    key = jax.random.PRNGKey(0)
    ks = jax.random.split(key, 11)

    x = jax.random.normal(ks[0], (B, IN_DIM), jnp.float32)

    w0 = jax.random.normal(ks[1], (WINDOW_K, IN_DIM, HIDDEN), jnp.float32) / jnp.sqrt(IN_DIM)
    g0 = 1.0 + 0.1 * jax.random.normal(ks[2], (WINDOW_K, 1, HIDDEN), jnp.float32)
    b0 = 0.1 * jax.random.normal(ks[3], (WINDOW_K, 1, HIDDEN), jnp.float32)
    wblk = jax.random.normal(ks[4], (WINDOW_K, N_BLOCKS, HIDDEN, HIDDEN), jnp.float32) / jnp.sqrt(HIDDEN)
    gblk = 1.0 + 0.1 * jax.random.normal(ks[5], (WINDOW_K, N_BLOCKS, HIDDEN), jnp.float32)
    bblk = 0.1 * jax.random.normal(ks[6], (WINDOW_K, N_BLOCKS, HIDDEN), jnp.float32)
    w1 = jax.random.normal(ks[7], (WINDOW_K, HIDDEN, HIDDEN), jnp.float32) / jnp.sqrt(HIDDEN)
    b1 = 0.1 * jax.random.normal(ks[8], (WINDOW_K, 1, HIDDEN), jnp.float32)
    wf = jax.random.normal(ks[9], (WINDOW_K, HIDDEN, OUT_DIM), jnp.float32) / jnp.sqrt(HIDDEN)
    bf = 0.1 * jax.random.normal(ks[10], (WINDOW_K, 1, OUT_DIM), jnp.float32)

    params = (w0, g0, b0, wblk, gblk, bblk, w1, b1, wf, bf)

    semantics = base_disentangle_forward(x, params, n_blocks=N_BLOCKS)
    semantics = [jax.block_until_ready(s) for s in semantics]

    # Cross-check against a pure-JAX reference of the PyTorch forward (eval mode),
    # using the same bf16-operand / f32-accumulate matmul contract as the kernel.
    for k in range(WINDOW_K):
        ref = _mlp_reference(
            x, w0[k], g0[k, 0], b0[k, 0], wblk[k], gblk[k], bblk[k],
            w1[k], b1[k, 0], wf[k], bf[k, 0], N_BLOCKS)
        assert semantics[k].shape == (B, OUT_DIM)
        err = float(jnp.max(jnp.abs(semantics[k] - ref)))
        assert jnp.allclose(semantics[k], ref, atol=5e-3, rtol=5e-3), \
            f"mismatch in window {k}: max err {err}"

    print("KERNEL_OK")
</pallas_src>

<mosaic_0001>
module attributes {stable_mosaic.version = 11 : i64} {
  func.func @_mlp_kernel(%arg0: i32, %arg1: memref<16x128xbf16, #tpu.memory_space<vmem>>, %arg2: memref<3x128x128xbf16, #tpu.memory_space<vmem>>, %arg3: memref<3x4x128x128xbf16, #tpu.memory_space<vmem>>, %arg4: memref<3x8x128xf32, #tpu.memory_space<vmem>>, %arg5: memref<3x16x128xf32, #tpu.memory_space<vmem>>) attributes {dimension_semantics = [#tpu.dimension_semantics<parallel>], iteration_bounds = array<i64: 1>, scalar_prefetch = 0 : i64, scratch_operands = 0 : i64, tpu.core_type = #tpu.core_type<tc>, window_params = [{pipeline_mode = #tpu.pipeline_mode<synchronous>, transform_indices = @transform_0, window_bounds = array<i64: 16, 128>}, {transform_indices = @transform_1, window_bounds = array<i64: 3, 128, 128>}, {transform_indices = @transform_2, window_bounds = array<i64: 3, 4, 128, 128>}, {transform_indices = @transform_3, window_bounds = array<i64: 3, 8, 128>}, {transform_indices = @transform_4, window_bounds = array<i64: 3, 16, 128>}]} {
    %c0 = arith.constant 0 : index
    %c0_0 = arith.constant 0 : index
    %0 = vector.load %arg1[%c0, %c0_0] : memref<16x128xbf16, #tpu.memory_space<vmem>>, vector<16x128xbf16>
    %c0_1 = arith.constant 0 : index
    %c0_2 = arith.constant 0 : index
    %c0_3 = arith.constant 0 : index
    %1 = vector.load %arg4[%c0_1, %c0_2, %c0_3] : memref<3x8x128xf32, #tpu.memory_space<vmem>>, vector<1x8x128xf32>
    %2 = vector.shape_cast %1 : vector<1x8x128xf32> to vector<8x128xf32>
    %3 = vector.extract_strided_slice %2 {offsets = [0, 0], sizes = [1, 128], strides = [1, 1]} : vector<8x128xf32> to vector<1x128xf32>
    %4 = vector.extract_strided_slice %2 {offsets = [1, 0], sizes = [1, 128], strides = [1, 1]} : vector<8x128xf32> to vector<1x128xf32>
    %5 = vector.extract_strided_slice %2 {offsets = [6, 0], sizes = [1, 128], strides = [1, 1]} : vector<8x128xf32> to vector<1x128xf32>
    %6 = vector.extract_strided_slice %2 {offsets = [7, 0], sizes = [1, 128], strides = [1, 1]} : vector<8x128xf32> to vector<1x128xf32>
    %c0_4 = arith.constant 0 : index
    %c0_5 = arith.constant 0 : index
    %c0_6 = arith.constant 0 : index
    %7 = vector.load %arg2[%c0_4, %c0_5, %c0_6] : memref<3x128x128xbf16, #tpu.memory_space<vmem>>, vector<1x128x128xbf16>
    %8 = vector.shape_cast %7 : vector<1x128x128xbf16> to vector<128x128xbf16>
    %cst = arith.constant dense<0.000000e+00> : vector<16x128xf32>
    %9 = tpu.matmul %0, %8, %cst {dimension_numbers = #tpu.dot_dimension_numbers<[1], [0], [0], [1], [0, 0, 1, 1], [], []>} : vector<16x128xbf16>, vector<128x128xbf16>, vector<16x128xf32> -> vector<16x128xf32>
    %cst_7 = arith.constant dense<0.000000e+00> : vector<16xf32>
    %10 = vector.multi_reduction <add>, %9, %cst_7 [1] : vector<16x128xf32> to vector<16xf32>
    %11 = vector.shape_cast %10 : vector<16xf32> to vector<16x1xf32>
    %cst_8 = arith.constant 1.280000e+02 : f32
    %12 = vector.broadcast %cst_8 : f32 to vector<16x1xf32>
    %13 = arith.divf %11, %12 : vector<16x1xf32>
    %14 = arith.mulf %9, %9 : vector<16x128xf32>
    %cst_9 = arith.constant dense<0.000000e+00> : vector<16xf32>
    %15 = vector.multi_reduction <add>, %14, %cst_9 [1] : vector<16x128xf32> to vector<16xf32>
    %16 = vector.shape_cast %15 : vector<16xf32> to vector<16x1xf32>
    %cst_10 = arith.constant 1.280000e+02 : f32
    %17 = vector.broadcast %cst_10 : f32 to vector<16x1xf32>
    %18 = arith.divf %16, %17 : vector<16x1xf32>
    %19 = arith.mulf %13, %13 : vector<16x1xf32>
    %20 = arith.subf %18, %19 : vector<16x1xf32>
    %cst_11 = arith.constant 0.000000e+00 : f32
    %21 = vector.broadcast %cst_11 : f32 to vector<16x1xf32>
    %22 = arith.maximumf %20, %21 : vector<16x1xf32>
    %cst_12 = arith.constant 9.99999974E-6 : f32
    %23 = vector.broadcast %cst_12 : f32 to vector<16x1xf32>
    %24 = arith.addf %22, %23 : vector<16x1xf32>
    %25 = math.rsqrt %24 : vector<16x1xf32>
    %26 = vector.broadcast %13 : vector<16x1xf32> to vector<16x128xf32>
    %27 = arith.subf %9, %26 : vector<16x128xf32>
    %28 = vector.broadcast %25 : vector<16x1xf32> to vector<16x128xf32>
    %29 = arith.mulf %27, %28 : vector<16x128xf32>
    %30 = vector.broadcast %3 : vector<1x128xf32> to vector<16x128xf32>
    %31 = arith.mulf %29, %30 : vector<16x128xf32>
    %32 = vector.broadcast %4 : vector<1x128xf32> to vector<16x128xf32>
    %33 = arith.addf %31, %32 : vector<16x128xf32>
    %cst_13 = arith.constant 0.000000e+00 : f32
    %34 = vector.broadcast %cst_13 : f32 to vector<16x128xf32>
    %35 = arith.maximumf %33, %34 : vector<16x128xf32>
    %36 = vector.extract_strided_slice %2 {offsets = [2, 0], sizes = [1, 128], strides = [1, 1]} : vector<8x128xf32> to vector<1x128xf32>
    %37 = vector.extract_strided_slice %2 {offsets = [4, 0], sizes = [1, 128], strides = [1, 1]} : vector<8x128xf32> to vector<1x128xf32>
    %c0_14 = arith.constant 0 : index
    %c0_15 = arith.constant 0 : index
    %c0_16 = arith.constant 0 : index
    %c0_17 = arith.constant 0 : index
    %38 = vector.load %arg3[%c0_14, %c0_15, %c0_16, %c0_17] : memref<3x4x128x128xbf16, #tpu.memory_space<vmem>>, vector<1x1x128x128xbf16>
    %39 = vector.shape_cast %38 : vector<1x1x128x128xbf16> to vector<128x128xbf16>
    %40 = arith.truncf %35 : vector<16x128xf32> to vector<16x128xbf16>
    %cst_18 = arith.constant dense<0.000000e+00> : vector<16x128xf32>
    %41 = tpu.matmul %40, %39, %cst_18 {dimension_numbers = #tpu.dot_dimension_numbers<[1], [0], [0], [1], [0, 0, 1, 1], [], []>} : vector<16x128xbf16>, vector<128x128xbf16>, vector<16x128xf32> -> vector<16x128xf32>
    %cst_19 = arith.constant dense<0.000000e+00> : vector<16xf32>
    %42 = vector.multi_reduction <add>, %41, %cst_19 [1] : vector<16x128xf32> to vector<16xf32>
    %43 = vector.shape_cast %42 : vector<16xf32> to vector<16x1xf32>
    %cst_20 = arith.constant 1.280000e+02 : f32
    %44 = vector.broadcast %cst_20 : f32 to vector<16x1xf32>
    %45 = arith.divf %43, %44 : vector<16x1xf32>
    %46 = arith.mulf %41, %41 : vector<16x128xf32>
    %cst_21 = arith.constant dense<0.000000e+00> : vector<16xf32>
    %47 = vector.multi_reduction <add>, %46, %cst_21 [1] : vector<16x128xf32> to vector<16xf32>
    %48 = vector.shape_cast %47 : vector<16xf32> to vector<16x1xf32>
    %cst_22 = arith.constant 1.280000e+02 : f32
    %49 = vector.broadcast %cst_22 : f32 to vector<16x1xf32>
    %50 = arith.divf %48, %49 : vector<16x1xf32>
    %51 = arith.mulf %45, %45 : vector<16x1xf32>
    %52 = arith.subf %50, %51 : vector<16x1xf32>
    %cst_23 = arith.constant 0.000000e+00 : f32
    %53 = vector.broadcast %cst_23 : f32 to vector<16x1xf32>
    %54 = arith.maximumf %52, %53 : vector<16x1xf32>
    %cst_24 = arith.constant 9.99999974E-6 : f32
    %55 = vector.broadcast %cst_24 : f32 to vector<16x1xf32>
    %56 = arith.addf %54, %55 : vector<16x1xf32>
    %57 = math.rsqrt %56 : vector<16x1xf32>
    %58 = vector.broadcast %45 : vector<16x1xf32> to vector<16x128xf32>
    %59 = arith.subf %41, %58 : vector<16x128xf32>
    %60 = vector.broadcast %57 : vector<16x1xf32> to vector<16x128xf32>
    %61 = arith.mulf %59, %60 : vector<16x128xf32>
    %62 = vector.broadcast %36 : vector<1x128xf32> to vector<16x128xf32>
    %63 = arith.mulf %61, %62 : vector<16x128xf32>
    %64 = vector.broadcast %37 : vector<1x128xf32> to vector<16x128xf32>
    %65 = arith.addf %63, %64 : vector<16x128xf32>
    %cst_25 = arith.constant 0.000000e+00 : f32
    %66 = vector.broadcast %cst_25 : f32 to vector<16x128xf32>
    %67 = arith.maximumf %65, %66 : vector<16x128xf32>
    %68 = arith.addf %67, %35 : vector<16x128xf32>
    %69 = vector.extract_strided_slice %2 {offsets = [3, 0], sizes = [1, 128], strides = [1, 1]} : vector<8x128xf32> to vector<1x128xf32>
    %70 = vector.extract_strided_slice %2 {offsets = [5, 0], sizes = [1, 128], strides = [1, 1]} : vector<8x128xf32> to vector<1x128xf32>
    %c0_26 = arith.constant 0 : index
    %c1 = arith.constant 1 : index
    %c0_27 = arith.constant 0 : index
    %c0_28 = arith.constant 0 : index
    %71 = vector.load %arg3[%c0_26, %c1, %c0_27, %c0_28] : memref<3x4x128x128xbf16, #tpu.memory_space<vmem>>, vector<1x1x128x128xbf16>
    %72 = vector.shape_cast %71 : vector<1x1x128x128xbf16> to vector<128x128xbf16>
    %73 = arith.truncf %68 : vector<16x128xf32> to vector<16x128xbf16>
    %cst_29 = arith.constant dense<0.000000e+00> : vector<16x128xf32>
    %74 = tpu.matmul %73, %72, %cst_29 {dimension_numbers = #tpu.dot_dimension_numbers<[1], [0], [0], [1], [0, 0, 1, 1], [], []>} : vector<16x128xbf16>, vector<128x128xbf16>, vector<16x128xf32> -> vector<16x128xf32>
    %cst_30 = arith.constant dense<0.000000e+00> : vector<16xf32>
    %75 = vector.multi_reduction <add>, %74, %cst_30 [1] : vector<16x128xf32> to vector<16xf32>
    %76 = vector.shape_cast %75 : vector<16xf32> to vector<16x1xf32>
    %cst_31 = arith.constant 1.280000e+02 : f32
    %77 = vector.broadcast %cst_31 : f32 to vector<16x1xf32>
    %78 = arith.divf %76, %77 : vector<16x1xf32>
    %79 = arith.mulf %74, %74 : vector<16x128xf32>
    %cst_32 = arith.constant dense<0.000000e+00> : vector<16xf32>
    %80 = vector.multi_reduction <add>, %79, %cst_32 [1] : vector<16x128xf32> to vector<16xf32>
    %81 = vector.shape_cast %80 : vector<16xf32> to vector<16x1xf32>
    %cst_33 = arith.constant 1.280000e+02 : f32
    %82 = vector.broadcast %cst_33 : f32 to vector<16x1xf32>
    %83 = arith.divf %81, %82 : vector<16x1xf32>
    %84 = arith.mulf %78, %78 : vector<16x1xf32>
    %85 = arith.subf %83, %84 : vector<16x1xf32>
    %cst_34 = arith.constant 0.000000e+00 : f32
    %86 = vector.broadcast %cst_34 : f32 to vector<16x1xf32>
    %87 = arith.maximumf %85, %86 : vector<16x1xf32>
    %cst_35 = arith.constant 9.99999974E-6 : f32
    %88 = vector.broadcast %cst_35 : f32 to vector<16x1xf32>
    %89 = arith.addf %87, %88 : vector<16x1xf32>
    %90 = math.rsqrt %89 : vector<16x1xf32>
    %91 = vector.broadcast %78 : vector<16x1xf32> to vector<16x128xf32>
    %92 = arith.subf %74, %91 : vector<16x128xf32>
    %93 = vector.broadcast %90 : vector<16x1xf32> to vector<16x128xf32>
    %94 = arith.mulf %92, %93 : vector<16x128xf32>
    %95 = vector.broadcast %69 : vector<1x128xf32> to vector<16x128xf32>
    %96 = arith.mulf %94, %95 : vector<16x128xf32>
    %97 = vector.broadcast %70 : vector<1x128xf32> to vector<16x128xf32>
    %98 = arith.addf %96, %97 : vector<16x128xf32>
    %cst_36 = arith.constant 0.000000e+00 : f32
    %99 = vector.broadcast %cst_36 : f32 to vector<16x128xf32>
    %100 = arith.maximumf %98, %99 : vector<16x128xf32>
    %101 = arith.addf %100, %68 : vector<16x128xf32>
    %c0_37 = arith.constant 0 : index
    %c2 = arith.constant 2 : index
    %c0_38 = arith.constant 0 : index
    %c0_39 = arith.constant 0 : index
    %102 = vector.load %arg3[%c0_37, %c2, %c0_38, %c0_39] : memref<3x4x128x128xbf16, #tpu.memory_space<vmem>>, vector<1x1x128x128xbf16>
    %103 = vector.shape_cast %102 : vector<1x1x128x128xbf16> to vector<128x128xbf16>
    %104 = arith.truncf %101 : vector<16x128xf32> to vector<16x128xbf16>
    %cst_40 = arith.constant dense<0.000000e+00> : vector<16x128xf32>
    %105 = tpu.matmul %104, %103, %cst_40 {dimension_numbers = #tpu.dot_dimension_numbers<[1], [0], [0], [1], [0, 0, 1, 1], [], []>} : vector<16x128xbf16>, vector<128x128xbf16>, vector<16x128xf32> -> vector<16x128xf32>
    %106 = vector.broadcast %5 : vector<1x128xf32> to vector<16x128xf32>
    %107 = arith.addf %105, %106 : vector<16x128xf32>
    %c0_41 = arith.constant 0 : index
    %c3 = arith.constant 3 : index
    %c0_42 = arith.constant 0 : index
    %c0_43 = arith.constant 0 : index
    %108 = vector.load %arg3[%c0_41, %c3, %c0_42, %c0_43] : memref<3x4x128x128xbf16, #tpu.memory_space<vmem>>, vector<1x1x128x128xbf16>
    %109 = vector.shape_cast %108 : vector<1x1x128x128xbf16> to vector<128x128xbf16>
    %110 = arith.truncf %107 : vector<16x128xf32> to vector<16x128xbf16>
    %cst_44 = arith.constant dense<0.000000e+00> : vector<16x128xf32>
    %111 = tpu.matmul %110, %109, %cst_44 {dimension_numbers = #tpu.dot_dimension_numbers<[1], [0], [0], [1], [0, 0, 1, 1], [], []>} : vector<16x128xbf16>, vector<128x128xbf16>, vector<16x128xf32> -> vector<16x128xf32>
    %112 = vector.broadcast %6 : vector<1x128xf32> to vector<16x128xf32>
    %113 = arith.addf %111, %112 : vector<16x128xf32>
    %c0_45 = arith.constant 0 : index
    %c0_46 = arith.constant 0 : index
    %c0_47 = arith.constant 0 : index
    %114 = vector.load %arg5[%c0_45, %c0_46, %c0_47] : memref<3x16x128xf32, #tpu.memory_space<vmem>>, vector<1x16x128xf32>
    %115 = vector.shape_cast %114 : vector<1x16x128xf32> to vector<16x128xf32>
    %116 = vector.shape_cast %113 : vector<16x128xf32> to vector<1x16x128xf32>
    tpu.vector_store %arg5[%c0_45, %c0_46, %c0_47], %116 {strides = array<i32>} : memref<3x16x128xf32, #tpu.memory_space<vmem>>, vector<1x16x128xf32>,
    %c1_48 = arith.constant 1 : index
    %c0_49 = arith.constant 0 : index
    %c0_50 = arith.constant 0 : index
    %117 = vector.load %arg4[%c1_48, %c0_49, %c0_50] : memref<3x8x128xf32, #tpu.memory_space<vmem>>, vector<1x8x128xf32>
    %118 = vector.shape_cast %117 : vector<1x8x128xf32> to vector<8x128xf32>
    %119 = vector.extract_strided_slice %118 {offsets = [0, 0], sizes = [1, 128], strides = [1, 1]} : vector<8x128xf32> to vector<1x128xf32>
    %120 = vector.extract_strided_slice %118 {offsets = [1, 0], sizes = [1, 128], strides = [1, 1]} : vector<8x128xf32> to vector<1x128xf32>
    %121 = vector.extract_strided_slice %118 {offsets = [6, 0], sizes = [1, 128], strides = [1, 1]} : vector<8x128xf32> to vector<1x128xf32>
    %122 = vector.extract_strided_slice %118 {offsets = [7, 0], sizes = [1, 128], strides = [1, 1]} : vector<8x128xf32> to vector<1x128xf32>
    %c1_51 = arith.constant 1 : index
    %c0_52 = arith.constant 0 : index
    %c0_53 = arith.constant 0 : index
    %123 = vector.load %arg2[%c1_51, %c0_52, %c0_53] : memref<3x128x128xbf16, #tpu.memory_space<vmem>>, vector<1x128x128xbf16>
    %124 = vector.shape_cast %123 : vector<1x128x128xbf16> to vector<128x128xbf16>
    %cst_54 = arith.constant dense<0.000000e+00> : vector<16x128xf32>
    %125 = tpu.matmul %0, %124, %cst_54 {dimension_numbers = #tpu.dot_dimension_numbers<[1], [0], [0], [1], [0, 0, 1, 1], [], []>} : vector<16x128xbf16>, vector<128x128xbf16>, vector<16x128xf32> -> vector<16x128xf32>
    %cst_55 = arith.constant dense<0.000000e+00> : vector<16xf32>
    %126 = vector.multi_reduction <add>, %125, %cst_55 [1] : vector<16x128xf32> to vector<16xf32>
    %127 = vector.shape_cast %126 : vector<16xf32> to vector<16x1xf32>
    %cst_56 = arith.constant 1.280000e+02 : f32
    %128 = vector.broadcast %cst_56 : f32 to vector<16x1xf32>
    %129 = arith.divf %127, %128 : vector<16x1xf32>
    %130 = arith.mulf %125, %125 : vector<16x128xf32>
    %cst_57 = arith.constant dense<0.000000e+00> : vector<16xf32>
    %131 = vector.multi_reduction <add>, %130, %cst_57 [1] : vector<16x128xf32> to vector<16xf32>
    %132 = vector.shape_cast %131 : vector<16xf32> to vector<16x1xf32>
    %cst_58 = arith.constant 1.280000e+02 : f32
    %133 = vector.broadcast %cst_58 : f32 to vector<16x1xf32>
    %134 = arith.divf %132, %133 : vector<16x1xf32>
    %135 = arith.mulf %129, %129 : vector<16x1xf32>
    %136 = arith.subf %134, %135 : vector<16x1xf32>
    %cst_59 = arith.constant 0.000000e+00 : f32
    %137 = vector.broadcast %cst_59 : f32 to vector<16x1xf32>
    %138 = arith.maximumf %136, %137 : vector<16x1xf32>
    %cst_60 = arith.constant 9.99999974E-6 : f32
    %139 = vector.broadcast %cst_60 : f32 to vector<16x1xf32>
    %140 = arith.addf %138, %139 : vector<16x1xf32>
    %141 = math.rsqrt %140 : vector<16x1xf32>
    %142 = vector.broadcast %129 : vector<16x1xf32> to vector<16x128xf32>
    %143 = arith.subf %125, %142 : vector<16x128xf32>
    %144 = vector.broadcast %141 : vector<16x1xf32> to vector<16x128xf32>
    %145 = arith.mulf %143, %144 : vector<16x128xf32>
    %146 = vector.broadcast %119 : vector<1x128xf32> to vector<16x128xf32>
    %147 = arith.mulf %145, %146 : vector<16x128xf32>
    %148 = vector.broadcast %120 : vector<1x128xf32> to vector<16x128xf32>
    %149 = arith.addf %147, %148 : vector<16x128xf32>
    %cst_61 = arith.constant 0.000000e+00 : f32
    %150 = vector.broadcast %cst_61 : f32 to vector<16x128xf32>
    %151 = arith.maximumf %149, %150 : vector<16x128xf32>
    %152 = vector.extract_strided_slice %118 {offsets = [2, 0], sizes = [1, 128], strides = [1, 1]} : vector<8x128xf32> to vector<1x128xf32>
    %153 = vector.extract_strided_slice %118 {offsets = [4, 0], sizes = [1, 128], strides = [1, 1]} : vector<8x128xf32> to vector<1x128xf32>
    %c1_62 = arith.constant 1 : index
    %c0_63 = arith.constant 0 : index
    %c0_64 = arith.constant 0 : index
    %c0_65 = arith.constant 0 : index
    %154 = vector.load %arg3[%c1_62, %c0_63, %c0_64, %c0_65] : memref<3x4x128x128xbf16, #tpu.memory_space<vmem>>, vector<1x1x128x128xbf16>
    %155 = vector.shape_cast %154 : vector<1x1x128x128xbf16> to vector<128x128xbf16>
    %156 = arith.truncf %151 : vector<16x128xf32> to vector<16x128xbf16>
    %cst_66 = arith.constant dense<0.000000e+00> : vector<16x128xf32>
    %157 = tpu.matmul %156, %155, %cst_66 {dimension_numbers = #tpu.dot_dimension_numbers<[1], [0], [0], [1], [0, 0, 1, 1], [], []>} : vector<16x128xbf16>, vector<128x128xbf16>, vector<16x128xf32> -> vector<16x128xf32>
    %cst_67 = arith.constant dense<0.000000e+00> : vector<16xf32>
    %158 = vector.multi_reduction <add>, %157, %cst_67 [1] : vector<16x128xf32> to vector<16xf32>
    %159 = vector.shape_cast %158 : vector<16xf32> to vector<16x1xf32>
    %cst_68 = arith.constant 1.280000e+02 : f32
    %160 = vector.broadcast %cst_68 : f32 to vector<16x1xf32>
    %161 = arith.divf %159, %160 : vector<16x1xf32>
    %162 = arith.mulf %157, %157 : vector<16x128xf32>
    %cst_69 = arith.constant dense<0.000000e+00> : vector<16xf32>
    %163 = vector.multi_reduction <add>, %162, %cst_69 [1] : vector<16x128xf32> to vector<16xf32>
    %164 = vector.shape_cast %163 : vector<16xf32> to vector<16x1xf32>
    %cst_70 = arith.constant 1.280000e+02 : f32
    %165 = vector.broadcast %cst_70 : f32 to vector<16x1xf32>
    %166 = arith.divf %164, %165 : vector<16x1xf32>
    %167 = arith.mulf %161, %161 : vector<16x1xf32>
    %168 = arith.subf %166, %167 : vector<16x1xf32>
    %cst_71 = arith.constant 0.000000e+00 : f32
    %169 = vector.broadcast %cst_71 : f32 to vector<16x1xf32>
    %170 = arith.maximumf %168, %169 : vector<16x1xf32>
    %cst_72 = arith.constant 9.99999974E-6 : f32
    %171 = vector.broadcast %cst_72 : f32 to vector<16x1xf32>
    %172 = arith.addf %170, %171 : vector<16x1xf32>
    %173 = math.rsqrt %172 : vector<16x1xf32>
    %174 = vector.broadcast %161 : vector<16x1xf32> to vector<16x128xf32>
    %175 = arith.subf %157, %174 : vector<16x128xf32>
    %176 = vector.broadcast %173 : vector<16x1xf32> to vector<16x128xf32>
    %177 = arith.mulf %175, %176 : vector<16x128xf32>
    %178 = vector.broadcast %152 : vector<1x128xf32> to vector<16x128xf32>
    %179 = arith.mulf %177, %178 : vector<16x128xf32>
    %180 = vector.broadcast %153 : vector<1x128xf32> to vector<16x128xf32>
    %181 = arith.addf %179, %180 : vector<16x128xf32>
    %cst_73 = arith.constant 0.000000e+00 : f32
    %182 = vector.broadcast %cst_73 : f32 to vector<16x128xf32>
    %183 = arith.maximumf %181, %182 : vector<16x128xf32>
    %184 = arith.addf %183, %151 : vector<16x128xf32>
    %185 = vector.extract_strided_slice %118 {offsets = [3, 0], sizes = [1, 128], strides = [1, 1]} : vector<8x128xf32> to vector<1x128xf32>
    %186 = vector.extract_strided_slice %118 {offsets = [5, 0], sizes = [1, 128], strides = [1, 1]} : vector<8x128xf32> to vector<1x128xf32>
    %c1_74 = arith.constant 1 : index
    %c1_75 = arith.constant 1 : index
    %c0_76 = arith.constant 0 : index
    %c0_77 = arith.constant 0 : index
    %187 = vector.load %arg3[%c1_74, %c1_75, %c0_76, %c0_77] : memref<3x4x128x128xbf16, #tpu.memory_space<vmem>>, vector<1x1x128x128xbf16>
    %188 = vector.shape_cast %187 : vector<1x1x128x128xbf16> to vector<128x128xbf16>
    %189 = arith.truncf %184 : vector<16x128xf32> to vector<16x128xbf16>
    %cst_78 = arith.constant dense<0.000000e+00> : vector<16x128xf32>
    %190 = tpu.matmul %189, %188, %cst_78 {dimension_numbers = #tpu.dot_dimension_numbers<[1], [0], [0], [1], [0, 0, 1, 1], [], []>} : vector<16x128xbf16>, vector<128x128xbf16>, vector<16x128xf32> -> vector<16x128xf32>
    %cst_79 = arith.constant dense<0.000000e+00> : vector<16xf32>
    %191 = vector.multi_reduction <add>, %190, %cst_79 [1] : vector<16x128xf32> to vector<16xf32>
    %192 = vector.shape_cast %191 : vector<16xf32> to vector<16x1xf32>
    %cst_80 = arith.constant 1.280000e+02 : f32
    %193 = vector.broadcast %cst_80 : f32 to vector<16x1xf32>
    %194 = arith.divf %192, %193 : vector<16x1xf32>
    %195 = arith.mulf %190, %190 : vector<16x128xf32>
    %cst_81 = arith.constant dense<0.000000e+00> : vector<16xf32>
    %196 = vector.multi_reduction <add>, %195, %cst_81 [1] : vector<16x128xf32> to vector<16xf32>
    %197 = vector.shape_cast %196 : vector<16xf32> to vector<16x1xf32>
    %cst_82 = arith.constant 1.280000e+02 : f32
    %198 = vector.broadcast %cst_82 : f32 to vector<16x1xf32>
    %199 = arith.divf %197, %198 : vector<16x1xf32>
    %200 = arith.mulf %194, %194 : vector<16x1xf32>
    %201 = arith.subf %199, %200 : vector<16x1xf32>
    %cst_83 = arith.constant 0.000000e+00 : f32
    %202 = vector.broadcast %cst_83 : f32 to vector<16x1xf32>
    %203 = arith.maximumf %201, %202 : vector<16x1xf32>
    %cst_84 = arith.constant 9.99999974E-6 : f32
    %204 = vector.broadcast %cst_84 : f32 to vector<16x1xf32>
    %205 = arith.addf %203, %204 : vector<16x1xf32>
    %206 = math.rsqrt %205 : vector<16x1xf32>
    %207 = vector.broadcast %194 : vector<16x1xf32> to vector<16x128xf32>
    %208 = arith.subf %190, %207 : vector<16x128xf32>
    %209 = vector.broadcast %206 : vector<16x1xf32> to vector<16x128xf32>
    %210 = arith.mulf %208, %209 : vector<16x128xf32>
    %211 = vector.broadcast %185 : vector<1x128xf32> to vector<16x128xf32>
    %212 = arith.mulf %210, %211 : vector<16x128xf32>
    %213 = vector.broadcast %186 : vector<1x128xf32> to vector<16x128xf32>
    %214 = arith.addf %212, %213 : vector<16x128xf32>
    %cst_85 = arith.constant 0.000000e+00 : f32
    %215 = vector.broadcast %cst_85 : f32 to vector<16x128xf32>
    %216 = arith.maximumf %214, %215 : vector<16x128xf32>
    %217 = arith.addf %216, %184 : vector<16x128xf32>
    %c1_86 = arith.constant 1 : index
    %c2_87 = arith.constant 2 : index
    %c0_88 = arith.constant 0 : index
    %c0_89 = arith.constant 0 : index
    %218 = vector.load %arg3[%c1_86, %c2_87, %c0_88, %c0_89] : memref<3x4x128x128xbf16, #tpu.memory_space<vmem>>, vector<1x1x128x128xbf16>
    %219 = vector.shape_cast %218 : vector<1x1x128x128xbf16> to vector<128x128xbf16>
    %220 = arith.truncf %217 : vector<16x128xf32> to vector<16x128xbf16>
    %cst_90 = arith.constant dense<0.000000e+00> : vector<16x128xf32>
    %221 = tpu.matmul %220, %219, %cst_90 {dimension_numbers = #tpu.dot_dimension_numbers<[1], [0], [0], [1], [0, 0, 1, 1], [], []>} : vector<16x128xbf16>, vector<128x128xbf16>, vector<16x128xf32> -> vector<16x128xf32>
    %222 = vector.broadcast %121 : vector<1x128xf32> to vector<16x128xf32>
    %223 = arith.addf %221, %222 : vector<16x128xf32>
    %c1_91 = arith.constant 1 : index
    %c3_92 = arith.constant 3 : index
    %c0_93 = arith.constant 0 : index
    %c0_94 = arith.constant 0 : index
    %224 = vector.load %arg3[%c1_91, %c3_92, %c0_93, %c0_94] : memref<3x4x128x128xbf16, #tpu.memory_space<vmem>>, vector<1x1x128x128xbf16>
    %225 = vector.shape_cast %224 : vector<1x1x128x128xbf16> to vector<128x128xbf16>
    %226 = arith.truncf %223 : vector<16x128xf32> to vector<16x128xbf16>
    %cst_95 = arith.constant dense<0.000000e+00> : vector<16x128xf32>
    %227 = tpu.matmul %226, %225, %cst_95 {dimension_numbers = #tpu.dot_dimension_numbers<[1], [0], [0], [1], [0, 0, 1, 1], [], []>} : vector<16x128xbf16>, vector<128x128xbf16>, vector<16x128xf32> -> vector<16x128xf32>
    %228 = vector.broadcast %122 : vector<1x128xf32> to vector<16x128xf32>
    %229 = arith.addf %227, %228 : vector<16x128xf32>
    %c1_96 = arith.constant 1 : index
    %c0_97 = arith.constant 0 : index
    %c0_98 = arith.constant 0 : index
    %230 = vector.load %arg5[%c1_96, %c0_97, %c0_98] : memref<3x16x128xf32, #tpu.memory_space<vmem>>, vector<1x16x128xf32>
    %231 = vector.shape_cast %230 : vector<1x16x128xf32> to vector<16x128xf32>
    %232 = vector.shape_cast %229 : vector<16x128xf32> to vector<1x16x128xf32>
    tpu.vector_store %arg5[%c1_96, %c0_97, %c0_98], %232 {strides = array<i32>} : memref<3x16x128xf32, #tpu.memory_space<vmem>>, vector<1x16x128xf32>,
    %c2_99 = arith.constant 2 : index
    %c0_100 = arith.constant 0 : index
    %c0_101 = arith.constant 0 : index
    %233 = vector.load %arg4[%c2_99, %c0_100, %c0_101] : memref<3x8x128xf32, #tpu.memory_space<vmem>>, vector<1x8x128xf32>
    %234 = vector.shape_cast %233 : vector<1x8x128xf32> to vector<8x128xf32>
    %235 = vector.extract_strided_slice %234 {offsets = [0, 0], sizes = [1, 128], strides = [1, 1]} : vector<8x128xf32> to vector<1x128xf32>
    %236 = vector.extract_strided_slice %234 {offsets = [1, 0], sizes = [1, 128], strides = [1, 1]} : vector<8x128xf32> to vector<1x128xf32>
    %237 = vector.extract_strided_slice %234 {offsets = [6, 0], sizes = [1, 128], strides = [1, 1]} : vector<8x128xf32> to vector<1x128xf32>
    %238 = vector.extract_strided_slice %234 {offsets = [7, 0], sizes = [1, 128], strides = [1, 1]} : vector<8x128xf32> to vector<1x128xf32>
    %c2_102 = arith.constant 2 : index
    %c0_103 = arith.constant 0 : index
    %c0_104 = arith.constant 0 : index
    %239 = vector.load %arg2[%c2_102, %c0_103, %c0_104] : memref<3x128x128xbf16, #tpu.memory_space<vmem>>, vector<1x128x128xbf16>
    %240 = vector.shape_cast %239 : vector<1x128x128xbf16> to vector<128x128xbf16>
    %cst_105 = arith.constant dense<0.000000e+00> : vector<16x128xf32>
    %241 = tpu.matmul %0, %240, %cst_105 {dimension_numbers = #tpu.dot_dimension_numbers<[1], [0], [0], [1], [0, 0, 1, 1], [], []>} : vector<16x128xbf16>, vector<128x128xbf16>, vector<16x128xf32> -> vector<16x128xf32>
    %cst_106 = arith.constant dense<0.000000e+00> : vector<16xf32>
    %242 = vector.multi_reduction <add>, %241, %cst_106 [1] : vector<16x128xf32> to vector<16xf32>
    %243 = vector.shape_cast %242 : vector<16xf32> to vector<16x1xf32>
    %cst_107 = arith.constant 1.280000e+02 : f32
    %244 = vector.broadcast %cst_107 : f32 to vector<16x1xf32>
    %245 = arith.divf %243, %244 : vector<16x1xf32>
    %246 = arith.mulf %241, %241 : vector<16x128xf32>
    %cst_108 = arith.constant dense<0.000000e+00> : vector<16xf32>
    %247 = vector.multi_reduction <add>, %246, %cst_108 [1] : vector<16x128xf32> to vector<16xf32>
    %248 = vector.shape_cast %247 : vector<16xf32> to vector<16x1xf32>
    %cst_109 = arith.constant 1.280000e+02 : f32
    %249 = vector.broadcast %cst_109 : f32 to vector<16x1xf32>
    %250 = arith.divf %248, %249 : vector<16x1xf32>
    %251 = arith.mulf %245, %245 : vector<16x1xf32>
    %252 = arith.subf %250, %251 : vector<16x1xf32>
    %cst_110 = arith.constant 0.000000e+00 : f32
    %253 = vector.broadcast %cst_110 : f32 to vector<16x1xf32>
    %254 = arith.maximumf %252, %253 : vector<16x1xf32>
    %cst_111 = arith.constant 9.99999974E-6 : f32
    %255 = vector.broadcast %cst_111 : f32 to vector<16x1xf32>
    %256 = arith.addf %254, %255 : vector<16x1xf32>
    %257 = math.rsqrt %256 : vector<16x1xf32>
    %258 = vector.broadcast %245 : vector<16x1xf32> to vector<16x128xf32>
    %259 = arith.subf %241, %258 : vector<16x128xf32>
    %260 = vector.broadcast %257 : vector<16x1xf32> to vector<16x128xf32>
    %261 = arith.mulf %259, %260 : vector<16x128xf32>
    %262 = vector.broadcast %235 : vector<1x128xf32> to vector<16x128xf32>
    %263 = arith.mulf %261, %262 : vector<16x128xf32>
    %264 = vector.broadcast %236 : vector<1x128xf32> to vector<16x128xf32>
    %265 = arith.addf %263, %264 : vector<16x128xf32>
    %cst_112 = arith.constant 0.000000e+00 : f32
    %266 = vector.broadcast %cst_112 : f32 to vector<16x128xf32>
    %267 = arith.maximumf %265, %266 : vector<16x128xf32>
    %268 = vector.extract_strided_slice %234 {offsets = [2, 0], sizes = [1, 128], strides = [1, 1]} : vector<8x128xf32> to vector<1x128xf32>
    %269 = vector.extract_strided_slice %234 {offsets = [4, 0], sizes = [1, 128], strides = [1, 1]} : vector<8x128xf32> to vector<1x128xf32>
    %c2_113 = arith.constant 2 : index
    %c0_114 = arith.constant 0 : index
    %c0_115 = arith.constant 0 : index
    %c0_116 = arith.constant 0 : index
    %270 = vector.load %arg3[%c2_113, %c0_114, %c0_115, %c0_116] : memref<3x4x128x128xbf16, #tpu.memory_space<vmem>>, vector<1x1x128x128xbf16>
    %271 = vector.shape_cast %270 : vector<1x1x128x128xbf16> to vector<128x128xbf16>
    %272 = arith.truncf %267 : vector<16x128xf32> to vector<16x128xbf16>
    %cst_117 = arith.constant dense<0.000000e+00> : vector<16x128xf32>
    %273 = tpu.matmul %272, %271, %cst_117 {dimension_numbers = #tpu.dot_dimension_numbers<[1], [0], [0], [1], [0, 0, 1, 1], [], []>} : vector<16x128xbf16>, vector<128x128xbf16>, vector<16x128xf32> -> vector<16x128xf32>
    %cst_118 = arith.constant dense<0.000000e+00> : vector<16xf32>
    %274 = vector.multi_reduction <add>, %273, %cst_118 [1] : vector<16x128xf32> to vector<16xf32>
    %275 = vector.shape_cast %274 : vector<16xf32> to vector<16x1xf32>
    %cst_119 = arith.constant 1.280000e+02 : f32
    %276 = vector.broadcast %cst_119 : f32 to vector<16x1xf32>
    %277 = arith.divf %275, %276 : vector<16x1xf32>
    %278 = arith.mulf %273, %273 : vector<16x128xf32>
    %cst_120 = arith.constant dense<0.000000e+00> : vector<16xf32>
    %279 = vector.multi_reduction <add>, %278, %cst_120 [1] : vector<16x128xf32> to vector<16xf32>
    %280 = vector.shape_cast %279 : vector<16xf32> to vector<16x1xf32>
    %cst_121 = arith.constant 1.280000e+02 : f32
    %281 = vector.broadcast %cst_121 : f32 to vector<16x1xf32>
    %282 = arith.divf %280, %281 : vector<16x1xf32>
    %283 = arith.mulf %277, %277 : vector<16x1xf32>
    %284 = arith.subf %282, %283 : vector<16x1xf32>
    %cst_122 = arith.constant 0.000000e+00 : f32
    %285 = vector.broadcast %cst_122 : f32 to vector<16x1xf32>
    %286 = arith.maximumf %284, %285 : vector<16x1xf32>
    %cst_123 = arith.constant 9.99999974E-6 : f32
    %287 = vector.broadcast %cst_123 : f32 to vector<16x1xf32>
    %288 = arith.addf %286, %287 : vector<16x1xf32>
    %289 = math.rsqrt %288 : vector<16x1xf32>
    %290 = vector.broadcast %277 : vector<16x1xf32> to vector<16x128xf32>
    %291 = arith.subf %273, %290 : vector<16x128xf32>
    %292 = vector.broadcast %289 : vector<16x1xf32> to vector<16x128xf32>
    %293 = arith.mulf %291, %292 : vector<16x128xf32>
    %294 = vector.broadcast %268 : vector<1x128xf32> to vector<16x128xf32>
    %295 = arith.mulf %293, %294 : vector<16x128xf32>
    %296 = vector.broadcast %269 : vector<1x128xf32> to vector<16x128xf32>
    %297 = arith.addf %295, %296 : vector<16x128xf32>
    %cst_124 = arith.constant 0.000000e+00 : f32
    %298 = vector.broadcast %cst_124 : f32 to vector<16x128xf32>
    %299 = arith.maximumf %297, %298 : vector<16x128xf32>
    %300 = arith.addf %299, %267 : vector<16x128xf32>
    %301 = vector.extract_strided_slice %234 {offsets = [3, 0], sizes = [1, 128], strides = [1, 1]} : vector<8x128xf32> to vector<1x128xf32>
    %302 = vector.extract_strided_slice %234 {offsets = [5, 0], sizes = [1, 128], strides = [1, 1]} : vector<8x128xf32> to vector<1x128xf32>
    %c2_125 = arith.constant 2 : index
    %c1_126 = arith.constant 1 : index
    %c0_127 = arith.constant 0 : index
    %c0_128 = arith.constant 0 : index
    %303 = vector.load %arg3[%c2_125, %c1_126, %c0_127, %c0_128] : memref<3x4x128x128xbf16, #tpu.memory_space<vmem>>, vector<1x1x128x128xbf16>
    %304 = vector.shape_cast %303 : vector<1x1x128x128xbf16> to vector<128x128xbf16>
    %305 = arith.truncf %300 : vector<16x128xf32> to vector<16x128xbf16>
    %cst_129 = arith.constant dense<0.000000e+00> : vector<16x128xf32>
    %306 = tpu.matmul %305, %304, %cst_129 {dimension_numbers = #tpu.dot_dimension_numbers<[1], [0], [0], [1], [0, 0, 1, 1], [], []>} : vector<16x128xbf16>, vector<128x128xbf16>, vector<16x128xf32> -> vector<16x128xf32>
    %cst_130 = arith.constant dense<0.000000e+00> : vector<16xf32>
    %307 = vector.multi_reduction <add>, %306, %cst_130 [1] : vector<16x128xf32> to vector<16xf32>
    %308 = vector.shape_cast %307 : vector<16xf32> to vector<16x1xf32>
    %cst_131 = arith.constant 1.280000e+02 : f32
    %309 = vector.broadcast %cst_131 : f32 to vector<16x1xf32>
    %310 = arith.divf %308, %309 : vector<16x1xf32>
    %311 = arith.mulf %306, %306 : vector<16x128xf32>
    %cst_132 = arith.constant dense<0.000000e+00> : vector<16xf32>
    %312 = vector.multi_reduction <add>, %311, %cst_132 [1] : vector<16x128xf32> to vector<16xf32>
    %313 = vector.shape_cast %312 : vector<16xf32> to vector<16x1xf32>
    %cst_133 = arith.constant 1.280000e+02 : f32
    %314 = vector.broadcast %cst_133 : f32 to vector<16x1xf32>
    %315 = arith.divf %313, %314 : vector<16x1xf32>
    %316 = arith.mulf %310, %310 : vector<16x1xf32>
    %317 = arith.subf %315, %316 : vector<16x1xf32>
    %cst_134 = arith.constant 0.000000e+00 : f32
    %318 = vector.broadcast %cst_134 : f32 to vector<16x1xf32>
    %319 = arith.maximumf %317, %318 : vector<16x1xf32>
    %cst_135 = arith.constant 9.99999974E-6 : f32
    %320 = vector.broadcast %cst_135 : f32 to vector<16x1xf32>
    %321 = arith.addf %319, %320 : vector<16x1xf32>
    %322 = math.rsqrt %321 : vector<16x1xf32>
    %323 = vector.broadcast %310 : vector<16x1xf32> to vector<16x128xf32>
    %324 = arith.subf %306, %323 : vector<16x128xf32>
    %325 = vector.broadcast %322 : vector<16x1xf32> to vector<16x128xf32>
    %326 = arith.mulf %324, %325 : vector<16x128xf32>
    %327 = vector.broadcast %301 : vector<1x128xf32> to vector<16x128xf32>
    %328 = arith.mulf %326, %327 : vector<16x128xf32>
    %329 = vector.broadcast %302 : vector<1x128xf32> to vector<16x128xf32>
    %330 = arith.addf %328, %329 : vector<16x128xf32>
    %cst_136 = arith.constant 0.000000e+00 : f32
    %331 = vector.broadcast %cst_136 : f32 to vector<16x128xf32>
    %332 = arith.maximumf %330, %331 : vector<16x128xf32>
    %333 = arith.addf %332, %300 : vector<16x128xf32>
    %c2_137 = arith.constant 2 : index
    %c2_138 = arith.constant 2 : index
    %c0_139 = arith.constant 0 : index
    %c0_140 = arith.constant 0 : index
    %334 = vector.load %arg3[%c2_137, %c2_138, %c0_139, %c0_140] : memref<3x4x128x128xbf16, #tpu.memory_space<vmem>>, vector<1x1x128x128xbf16>
    %335 = vector.shape_cast %334 : vector<1x1x128x128xbf16> to vector<128x128xbf16>
    %336 = arith.truncf %333 : vector<16x128xf32> to vector<16x128xbf16>
    %cst_141 = arith.constant dense<0.000000e+00> : vector<16x128xf32>
    %337 = tpu.matmul %336, %335, %cst_141 {dimension_numbers = #tpu.dot_dimension_numbers<[1], [0], [0], [1], [0, 0, 1, 1], [], []>} : vector<16x128xbf16>, vector<128x128xbf16>, vector<16x128xf32> -> vector<16x128xf32>
    %338 = vector.broadcast %237 : vector<1x128xf32> to vector<16x128xf32>
    %339 = arith.addf %337, %338 : vector<16x128xf32>
    %c2_142 = arith.constant 2 : index
    %c3_143 = arith.constant 3 : index
    %c0_144 = arith.constant 0 : index
    %c0_145 = arith.constant 0 : index
    %340 = vector.load %arg3[%c2_142, %c3_143, %c0_144, %c0_145] : memref<3x4x128x128xbf16, #tpu.memory_space<vmem>>, vector<1x1x128x128xbf16>
    %341 = vector.shape_cast %340 : vector<1x1x128x128xbf16> to vector<128x128xbf16>
    %342 = arith.truncf %339 : vector<16x128xf32> to vector<16x128xbf16>
    %cst_146 = arith.constant dense<0.000000e+00> : vector<16x128xf32>
    %343 = tpu.matmul %342, %341, %cst_146 {dimension_numbers = #tpu.dot_dimension_numbers<[1], [0], [0], [1], [0, 0, 1, 1], [], []>} : vector<16x128xbf16>, vector<128x128xbf16>, vector<16x128xf32> -> vector<16x128xf32>
    %344 = vector.broadcast %238 : vector<1x128xf32> to vector<16x128xf32>
    %345 = arith.addf %343, %344 : vector<16x128xf32>
    %c2_147 = arith.constant 2 : index
    %c0_148 = arith.constant 0 : index
    %c0_149 = arith.constant 0 : index
    %346 = vector.load %arg5[%c2_147, %c0_148, %c0_149] : memref<3x16x128xf32, #tpu.memory_space<vmem>>, vector<1x16x128xf32>
    %347 = vector.shape_cast %346 : vector<1x16x128xf32> to vector<16x128xf32>
    %348 = vector.shape_cast %345 : vector<16x128xf32> to vector<1x16x128xf32>
    tpu.vector_store %arg5[%c2_147, %c0_148, %c0_149], %348 {strides = array<i32>} : memref<3x16x128xf32, #tpu.memory_space<vmem>>, vector<1x16x128xf32>,
    return
  }
  func.func @transform_0(%arg0: i32) -> (i32, i32) {
    %c0_i32 = arith.constant 0 : i32
    %c0_i32_0 = arith.constant 0 : i32
    %c0_i32_1 = arith.constant 0 : i32
    return %c0_i32, %c0_i32_0 : i32, i32
  }
  func.func @transform_1(%arg0: i32) -> (i32, i32, i32) {
    %c0_i32 = arith.constant 0 : i32
    %c0_i32_0 = arith.constant 0 : i32
    %c0_i32_1 = arith.constant 0 : i32
    return %arg0, %c0_i32, %c0_i32_0 : i32, i32, i32
  }
  func.func @transform_2(%arg0: i32) -> (i32, i32, i32, i32) {
    %c0_i32 = arith.constant 0 : i32
    %c0_i32_0 = arith.constant 0 : i32
    %c0_i32_1 = arith.constant 0 : i32
    %c0_i32_2 = arith.constant 0 : i32
    return %arg0, %c0_i32, %c0_i32_0, %c0_i32_1 : i32, i32, i32, i32
  }
  func.func @transform_3(%arg0: i32) -> (i32, i32, i32) {
    %c0_i32 = arith.constant 0 : i32
    %c0_i32_0 = arith.constant 0 : i32
    %c0_i32_1 = arith.constant 0 : i32
    return %arg0, %c0_i32, %c0_i32_0 : i32, i32, i32
  }
  func.func @transform_4(%arg0: i32) -> (i32, i32, i32) {
    %c0_i32 = arith.constant 0 : i32
    %c0_i32_0 = arith.constant 0 : i32
    %c0_i32_1 = arith.constant 0 : i32
    return %arg0, %c0_i32, %c0_i32_0 : i32, i32, i32
  }
}

</mosaic_0001>

<llo_original>
// kernel: tpu_custom_call.1
$region0: #{tpu_custom_call.1}
  #allocation0 [shape = 'u32[]', space=smem, size = 0x4, offset = 0x4, fixed_abs, tag = 'smem constant byte address 0x4 - core index']
  #allocation1 [shape = 'u32[144,128]{1,0:T(1,128)}', space=vmem, size = 0x12000, scoped, tag = 'internal scratch']
  %s0 = inlined_call_operand.hbm [shape: bf16[16,128], index: 0, kind: input, shape index: {}]
  %s1 = inlined_call_operand.hbm [shape: bf16[3,128,128], index: 1, kind: input, shape index: {}]
  %s2 = inlined_call_operand.hbm [shape: bf16[3,4,128,128], index: 2, kind: input, shape index: {}]
  %s3 = inlined_call_operand.hbm [shape: f32[3,8,128], index: 3, kind: input, shape index: {}]
  %s4 = inlined_call_operand.hbm [shape: f32[3,16,128], index: 4, kind: output, shape index: {}]
  %s5 = sld [smem:[#allocation0]]
  $region42: #{tpu_custom_call.1} parent=0
    _
  %s7 = ssub.s32 1, %s5
  %s8 = scalar_select 0, %s7, %s5
  $region1: #{tpu_custom_call.1} parent=0
    #allocation2 [shape = 'u8[4096]{0}', space=vmem, size = 0x1000, scoped, tag = 'input window, operand 0, single buffered']
    #allocation3 [shape = 's32[1]{0}', space=sflag, size = 0x4, scoped, tag = 'scoped memory for tpu_custom_call.1']
    #allocation4 [shape = 's32[1]{0}', space=sflag, size = 0x4, scoped, tag = 'scoped memory for tpu_custom_call.1']
    #allocation5 [shape = 'u8[98304]{0}', space=vmem, size = 0x18000, scoped, tag = 'input window, operand 1, single buffered']
    #allocation6 [shape = 's32[1]{0}', space=sflag, size = 0x4, scoped, tag = 'scoped memory for tpu_custom_call.1']
    #allocation7 [shape = 'u8[393216]{0}', space=vmem, size = 0x60000, scoped, tag = 'input window, operand 2, single buffered']
    #allocation8 [shape = 'u8[12288]{0}', space=vmem, size = 0x3000, scoped, tag = 'input window, operand 3, single buffered']
    #allocation9 [shape = 's32[1]{0}', space=sflag, size = 0x4, scoped, tag = 'scoped memory for tpu_custom_call.1']
    #allocation10 [shape = 'u8[24576]{0}', space=vmem, size = 0x6000, scoped, tag = 'output window, operand 0, single buffered']
    %9 = vsyncpa [#allocation3], 0
    %10 = vsyncpa [#allocation6], 0
    %11 = vsyncpa [#allocation9], 0
    %12 = vsyncpa [#allocation4], 0
    // Predicated region
    $region2: #{tpu_custom_call.1} parent=1 // pred_check
      _
    $region3: #{tpu_custom_call.1} parent=1 // pred_check_branch
      %14 = sbr.rel (0) target = $region5
    $region4: #{tpu_custom_call.1} parent=1 // pred_region
      %s16 = ssub.s32 128, 128
      %17 = vsyncadd [#allocation3], %s16
      %s18 = sshll.u32 [#allocation2], 4
      %s19 = int_to_ptr.vmem [resolvable:$true] %s18
      %24 = dma.hbm_to_vmem [thread:$0]  %s0, 128, %s19, [#allocation3], 64, 64, 4
    $region5: #{tpu_custom_call.1} parent=1 // pred_fallthru
      _
    // Predicated region
    $region6: #{tpu_custom_call.1} parent=1 // pred_check
      _
    $region7: #{tpu_custom_call.1} parent=1 // pred_check_branch
      %26 = sbr.rel (0) target = $region9
    $region8: #{tpu_custom_call.1} parent=1 // pred_region
      %s28 = ssub.s32 3072, 3072
      %29 = vsyncadd [#allocation6], %s28
      %s30 = sshll.u32 [#allocation5], 4
      %s31 = int_to_ptr.vmem [resolvable:$true] %s30
      %36 = dma.hbm_to_vmem [thread:$0]  %s1, 3072, %s31, [#allocation6], 64, 64, 4
    $region9: #{tpu_custom_call.1} parent=1 // pred_fallthru
      _
    // Predicated region
    $region10: #{tpu_custom_call.1} parent=1 // pred_check
      _
    $region11: #{tpu_custom_call.1} parent=1 // pred_check_branch
      %38 = sbr.rel (0) target = $region13
    $region12: #{tpu_custom_call.1} parent=1 // pred_region
      %s40 = ssub.s32 12288, 12288
      %41 = vsyncadd [#allocation6], %s40
      %s42 = sshll.u32 [#allocation7], 4
      %s43 = int_to_ptr.vmem [resolvable:$true] %s42
      %48 = dma.hbm_to_vmem [thread:$0]  %s2, 12288, %s43, [#allocation6], 64, 64, 4
    $region13: #{tpu_custom_call.1} parent=1 // pred_fallthru
      _
    // Predicated region
    $region14: #{tpu_custom_call.1} parent=1 // pred_check
      _
    $region15: #{tpu_custom_call.1} parent=1 // pred_check_branch
      %50 = sbr.rel (0) target = $region17
    $region16: #{tpu_custom_call.1} parent=1 // pred_region
      %s52 = ssub.s32 384, 384
      %53 = vsyncadd [#allocation9], %s52
      %s54 = sshll.u32 [#allocation8], 4
      %s55 = int_to_ptr.vmem [resolvable:$true] %s54
      %60 = dma.hbm_to_vmem [thread:$0]  %s3, 384, %s55, [#allocation9], 128, 128, 8
    $region17: #{tpu_custom_call.1} parent=1 // pred_fallthru
      _
    // Predicated region
    $region18: #{tpu_custom_call.1} parent=1 // pred_check
      _
    $region19: #{tpu_custom_call.1} parent=1 // pred_check_branch
      %62 = sbr.rel (0) target = $region21
    $region20: #{tpu_custom_call.1} parent=1 // pred_region
      %63 = dma.done [#allocation3], 128
    $region21: #{tpu_custom_call.1} parent=1 // pred_fallthru
      _
    // Predicated region
    $region22: #{tpu_custom_call.1} parent=1 // pred_check
      _
    $region23: #{tpu_custom_call.1} parent=1 // pred_check_branch
      %65 = sbr.rel (0) target = $region25
    $region24: #{tpu_custom_call.1} parent=1 // pred_region
      %66 = dma.done [#allocation6], 3072
    $region25: #{tpu_custom_call.1} parent=1 // pred_fallthru
      _
    // Predicated region
    $region26: #{tpu_custom_call.1} parent=1 // pred_check
      _
    $region27: #{tpu_custom_call.1} parent=1 // pred_check_branch
      %68 = sbr.rel (0) target = $region29
    $region28: #{tpu_custom_call.1} parent=1 // pred_region
      %69 = dma.done [#allocation6], 12288
    $region29: #{tpu_custom_call.1} parent=1 // pred_fallthru
      _
    // Predicated region
    $region30: #{tpu_custom_call.1} parent=1 // pred_check
      _
    $region31: #{tpu_custom_call.1} parent=1 // pred_check_branch
      %71 = sbr.rel (0) target = $region33
    $region32: #{tpu_custom_call.1} parent=1 // pred_region
      %72 = dma.done [#allocation9], 384
    $region33: #{tpu_custom_call.1} parent=1 // pred_fallthru
      _
    %v74 = vld [vmem:[#allocation2] sm:$0xf]
    %v75 = vld [vmem:[#allocation2 + $0x4] sm:$0xf]
    %v76 = vld [vmem:[#allocation8] sm:$0xff]
    %v77 = vld [vmem:[#allocation5] sm:$0xf]
    %v78 = vld [vmem:[#allocation5 + $0x4] sm:$0xf]
    %v79 = vld [vmem:[#allocation5 + $0x8] sm:$0xf]
    %v80 = vld [vmem:[#allocation5 + $0xc] sm:$0xf]
    %v81 = vld [vmem:[#allocation5 + $0x10] sm:$0xf]
    %v82 = vld [vmem:[#allocation5 + $0x14] sm:$0xf]
    %v83 = vld [vmem:[#allocation5 + $0x18] sm:$0xf]
    %v84 = vld [vmem:[#allocation5 + $0x1c] sm:$0xf]
    %v85 = vld [vmem:[#allocation5 + $0x20] sm:$0xf]
    %v86 = vld [vmem:[#allocation5 + $0x24] sm:$0xf]
    %v87 = vld [vmem:[#allocation5 + $0x28] sm:$0xf]
    %v88 = vld [vmem:[#allocation5 + $0x2c] sm:$0xf]
    %v89 = vld [vmem:[#allocation5 + $0x30] sm:$0xf]
    %v90 = vld [vmem:[#allocation5 + $0x34] sm:$0xf]
    %v91 = vld [vmem:[#allocation5 + $0x38] sm:$0xf]
    %v92 = vld [vmem:[#allocation5 + $0x3c] sm:$0xf]
    %v95 = vunpack.c.l.b16 %v74
    %v96 = vunpack.c.l.b16 %v75
    %v97 = vpack.c.b16 %v96, %v95
    %v115 = vunpack.c.l.b16 %v77
    %v116 = vunpack.c.l.b16 %v78
    %v117 = vunpack.c.l.b16 %v79
    %v118 = vunpack.c.l.b16 %v80
    %v119 = vunpack.c.l.b16 %v81
    %v120 = vunpack.c.l.b16 %v82
    %v121 = vunpack.c.l.b16 %v83
    %v122 = vunpack.c.l.b16 %v84
    %v123 = vunpack.c.l.b16 %v85
    %v124 = vunpack.c.l.b16 %v86
    %v125 = vunpack.c.l.b16 %v87
    %v126 = vunpack.c.l.b16 %v88
    %v127 = vunpack.c.l.b16 %v89
    %v128 = vunpack.c.l.b16 %v90
    %v129 = vunpack.c.l.b16 %v91
    %v130 = vunpack.c.l.b16 %v92
    %v131 = vpack.c.b16 %v116, %v115
    %v132 = vpack.c.b16 %v118, %v117
    %v133 = vpack.c.b16 %v120, %v119
    %v134 = vpack.c.b16 %v122, %v121
    %v135 = vpack.c.b16 %v124, %v123
    %v136 = vpack.c.b16 %v126, %v125
    %v137 = vpack.c.b16 %v128, %v127
    %v138 = vpack.c.b16 %v130, %v129
    %147 = vmatprep.subr.bf16.mxu0 0
    %148 = vmatpush1.bf16.msra.mxu0 %v138
    %149 = vmatprep.subr.bf16.mxu0 0
    %150 = vmatpush1.bf16.msra.mxu0 %v137
    %151 = vmatprep.subr.bf16.mxu0 0
    %152 = vmatpush1.bf16.msra.mxu0 %v136
    %153 = vmatprep.subr.bf16.mxu0 0
    %154 = vmatpush1.bf16.msra.mxu0 %v135
    %155 = vmatprep.subr.bf16.mxu0 0
    %156 = vmatpush1.bf16.msra.mxu0 %v134
    %157 = vmatprep.subr.bf16.mxu0 0
    %158 = vmatpush1.bf16.msra.mxu0 %v133
    %159 = vmatprep.subr.bf16.mxu0 0
    %160 = vmatpush1.bf16.msra.mxu0 %v132
    %161 = vmatprep.subr.bf16.mxu0 0
    %162 = vmatpush1.bf16.msra.mxu0 %v131
    %163 = vmatprep.subr.bf16.mxu0 0
    %164 = vmatpush2.bf16.msra.mxu0 0
    %165 = vmatprep.subr.bf16.mxu0 0
    %166 = vmatpush2.bf16.msra.mxu0 0
    %167 = vmatprep.subr.bf16.mxu0 0
    %168 = vmatpush2.bf16.msra.mxu0 0
    %169 = vmatprep.subr.bf16.mxu0 0
    %170 = vmatpush2.bf16.msra.mxu0 0
    %171 = vmatprep.subr.bf16.mxu0 0
    %172 = vmatpush2.bf16.msra.mxu0 0
    %173 = vmatprep.subr.bf16.mxu0 0
    %174 = vmatpush2.bf16.msra.mxu0 0
    %175 = vmatprep.subr.bf16.mxu0 0
    %176 = vmatpush2.bf16.msra.mxu0 0
    %177 = vmatprep.subr.bf16.mxu0 0
    %178 = vmatpush2.bf16.msra.mxu0 0
    %179 = vmatprep.mubr.bf16.mxu0 0
    %180 = vmatmul.mubr.bf16.gmra.mxu0 %v97
    %v181 = vpop.f32.mrf.mxu0
    %v182 = vadd.f32 0.0, %v181
    %v183 = vpop.f32.mrf.mxu0
    %v184 = vpop.f32.mrf.mxu0
    %v185 = vadd.f32 0.0, %v184
    %v186 = vpop.f32.mrf.mxu0
    %187 = vdwg.mxu0
    %188 = vadd.xlane.f32.xlu0 %v182
    %v189 = vpop.xlane.xlu0 %188
    %190 = vadd.xlane.f32.xlu0 %v185
    %v191 = vpop.xlane.xlu0 %190
    %v192 = vrcp.pop 128.0
    %v193 = vmul.f32 %v189, %v192
    %v194 = vmul.f32 %v191, %v192
    %v195 = vmul.f32 %v182, %v182
    %v196 = vmul.f32 %v185, %v185
    %197 = vadd.xlane.f32.xlu0 %v195
    %v198 = vpop.xlane.xlu0 %197
    %199 = vadd.xlane.f32.xlu0 %v196
    %v200 = vpop.xlane.xlu0 %199
    %v201 = vmul.f32 %v198, %v192
    %v202 = vmul.f32 %v200, %v192
    %v203 = vmul.f32 %v193, %v193
    %v204 = vmul.f32 %v194, %v194
    %v205 = vsub.f32 %v201, %v203
    %v206 = vsub.f32 %v202, %v204
    %v207 = vmax.f32 %v205, 0.0
    %v208 = vmax.f32 %v206, 0.0
    %v209 = vadd.f32 %v207, 1e-05
    %v210 = vadd.f32 %v208, 1e-05
    %v211 = vrsqrt.pop %v209
    %v212 = vrsqrt.pop %v210
    %v213 = vsub.f32 %v182, %v193
    %v214 = vsub.f32 %v185, %v194
    %v215 = vmul.f32 %v213, %v211
    %v216 = vmul.f32 %v214, %v212
    %v217 = vlaneseq
    %v218 = vshrl.u32 %v217, 7
    %v219 = vsub.s32 0, %v218
    %v220 = vrot.slane %v76, %v219
    %v221 = vmul.f32 %v215, %v220
    %v222 = vmul.f32 %v216, %v220
    %v223 = vlaneseq
    %v224 = vshrl.u32 %v223, 7
    %v225 = vsub.s32 1, %v224
    %v226 = vrot.slane %v76, %v225
    %v227 = vadd.f32 %v221, %v226
    %v228 = vadd.f32 %v222, %v226
    %v229 = vmax.f32 %v227, 0.0
    %v230 = vmax.f32 %v228, 0.0
    %v231 = vld [vmem:[#allocation7] sm:$0xf]
    %v232 = vld [vmem:[#allocation7 + $0x4] sm:$0xf]
    %v233 = vld [vmem:[#allocation7 + $0x8] sm:$0xf]
    %v234 = vld [vmem:[#allocation7 + $0xc] sm:$0xf]
    %v235 = vld [vmem:[#allocation7 + $0x10] sm:$0xf]
    %v236 = vld [vmem:[#allocation7 + $0x14] sm:$0xf]
    %v237 = vld [vmem:[#allocation7 + $0x18] sm:$0xf]
    %v238 = vld [vmem:[#allocation7 + $0x1c] sm:$0xf]
    %v239 = vld [vmem:[#allocation7 + $0x20] sm:$0xf]
    %v240 = vld [vmem:[#allocation7 + $0x24] sm:$0xf]
    %v241 = vld [vmem:[#allocation7 + $0x28] sm:$0xf]
    %v242 = vld [vmem:[#allocation7 + $0x2c] sm:$0xf]
    %v243 = vld [vmem:[#allocation7 + $0x30] sm:$0xf]
    %v244 = vld [vmem:[#allocation7 + $0x34] sm:$0xf]
    %v245 = vld [vmem:[#allocation7 + $0x38] sm:$0xf]
    %v246 = vld [vmem:[#allocation7 + $0x3c] sm:$0xf]
    %v247 = vpack.c.bf16 %v230, %v229
    %v264 = vunpack.c.l.b16 %v231
    %v265 = vunpack.c.l.b16 %v232
    %v266 = vunpack.c.l.b16 %v233
    %v267 = vunpack.c.l.b16 %v234
    %v268 = vunpack.c.l.b16 %v235
    %v269 = vunpack.c.l.b16 %v236
    %v270 = vunpack.c.l.b16 %v237
    %v271 = vunpack.c.l.b16 %v238
    %v272 = vunpack.c.l.b16 %v239
    %v273 = vunpack.c.l.b16 %v240
    %v274 = vunpack.c.l.b16 %v241
    %v275 = vunpack.c.l.b16 %v242
    %v276 = vunpack.c.l.b16 %v243
    %v277 = vunpack.c.l.b16 %v244
    %v278 = vunpack.c.l.b16 %v245
    %v279 = vunpack.c.l.b16 %v246
    %v280 = vpack.c.b16 %v265, %v264
    %v281 = vpack.c.b16 %v267, %v266
    %v282 = vpack.c.b16 %v269, %v268
    %v283 = vpack.c.b16 %v271, %v270
    %v284 = vpack.c.b16 %v273, %v272
    %v285 = vpack.c.b16 %v275, %v274
    %v286 = vpack.c.b16 %v277, %v276
    %v287 = vpack.c.b16 %v279, %v278
    %296 = vmatprep.subr.bf16.mxu0 0
    %297 = vmatpush1.bf16.msra.mxu0 %v287
    %298 = vmatprep.subr.bf16.mxu0 0
    %299 = vmatpush1.bf16.msra.mxu0 %v286
    %300 = vmatprep.subr.bf16.mxu0 0
    %301 = vmatpush1.bf16.msra.mxu0 %v285
    %302 = vmatprep.subr.bf16.mxu0 0
    %303 = vmatpush1.bf16.msra.mxu0 %v284
    %304 = vmatprep.subr.bf16.mxu0 0
    %305 = vmatpush1.bf16.msra.mxu0 %v283
    %306 = vmatprep.subr.bf16.mxu0 0
    %307 = vmatpush1.bf16.msra.mxu0 %v282
    %308 = vmatprep.subr.bf16.mxu0 0
    %309 = vmatpush1.bf16.msra.mxu0 %v281
    %310 = vmatprep.subr.bf16.mxu0 0
    %311 = vmatpush1.bf16.msra.mxu0 %v280
    %312 = vmatprep.subr.bf16.mxu0 0
    %313 = vmatpush2.bf16.msra.mxu0 0
    %314 = vmatprep.subr.bf16.mxu0 0
    %315 = vmatpush2.bf16.msra.mxu0 0
    %316 = vmatprep.subr.bf16.mxu0 0
    %317 = vmatpush2.bf16.msra.mxu0 0
    %318 = vmatprep.subr.bf16.mxu0 0
    %319 = vmatpush2.bf16.msra.mxu0 0
    %320 = vmatprep.subr.bf16.mxu0 0
    %321 = vmatpush2.bf16.msra.mxu0 0
    %322 = vmatprep.subr.bf16.mxu0 0
    %323 = vmatpush2.bf16.msra.mxu0 0
    %324 = vmatprep.subr.bf16.mxu0 0
    %325 = vmatpush2.bf16.msra.mxu0 0
    %326 = vmatprep.subr.bf16.mxu0 0
    %327 = vmatpush2.bf16.msra.mxu0 0
    %328 = vmatprep.mubr.bf16.mxu0 0
    %329 = vmatmul.mubr.bf16.gmra.mxu0 %v247
    %v330 = vpop.f32.mrf.mxu0
    %v331 = vadd.f32 0.0, %v330
    %v332 = vpop.f32.mrf.mxu0
    %v333 = vpop.f32.mrf.mxu0
    %v334 = vadd.f32 0.0, %v333
    %v335 = vpop.f32.mrf.mxu0
    %336 = vdwg.mxu0
    %337 = vadd.xlane.f32.xlu0 %v331
    %v338 = vpop.xlane.xlu0 %337
    %339 = vadd.xlane.f32.xlu0 %v334
    %v340 = vpop.xlane.xlu0 %339
    %v341 = vmul.f32 %v338, %v192
    %v342 = vmul.f32 %v340, %v192
    %v343 = vmul.f32 %v331, %v331
    %v344 = vmul.f32 %v334, %v334
    %345 = vadd.xlane.f32.xlu0 %v343
    %v346 = vpop.xlane.xlu0 %345
    %347 = vadd.xlane.f32.xlu0 %v344
    %v348 = vpop.xlane.xlu0 %347
    %v349 = vmul.f32 %v346, %v192
    %v350 = vmul.f32 %v348, %v192
    %v351 = vmul.f32 %v341, %v341
    %v352 = vmul.f32 %v342, %v342
    %v353 = vsub.f32 %v349, %v351
    %v354 = vsub.f32 %v350, %v352
    %v355 = vmax.f32 %v353, 0.0
    %v356 = vmax.f32 %v354, 0.0
    %v357 = vadd.f32 %v355, 1e-05
    %v358 = vadd.f32 %v356, 1e-05
    %v359 = vrsqrt.pop %v357
    %v360 = vrsqrt.pop %v358
    %v361 = vsub.f32 %v331, %v341
    %v362 = vsub.f32 %v334, %v342
    %v363 = vmul.f32 %v361, %v359
    %v364 = vmul.f32 %v362, %v360
    %v365 = vlaneseq
    %v366 = vshrl.u32 %v365, 7
    %v367 = vsub.s32 2, %v366
    %v368 = vrot.slane %v76, %v367
    %v369 = vmul.f32 %v363, %v368
    %v370 = vmul.f32 %v364, %v368
    %v371 = vlaneseq
    %v372 = vshrl.u32 %v371, 7
    %v373 = vsub.s32 4, %v372
    %v374 = vrot.slane %v76, %v373
    %v375 = vadd.f32 %v369, %v374
    %v376 = vadd.f32 %v370, %v374
    %v377 = vmax.f32 %v375, 0.0
    %v378 = vmax.f32 %v376, 0.0
    %v379 = vadd.f32 %v377, %v229
    %v380 = vadd.f32 %v378, %v230
    %s381 = scalar_lea.vmem [#allocation7], 64
    %v382 = vld [vmem:[%s381] sm:$0xf]
    %v383 = vld [vmem:[%s381 + $0x4] sm:$0xf]
    %v384 = vld [vmem:[%s381 + $0x8] sm:$0xf]
    %v385 = vld [vmem:[%s381 + $0xc] sm:$0xf]
    %v386 = vld [vmem:[%s381 + $0x10] sm:$0xf]
    %v387 = vld [vmem:[%s381 + $0x14] sm:$0xf]
    %v388 = vld [vmem:[%s381 + $0x18] sm:$0xf]
    %v389 = vld [vmem:[%s381 + $0x1c] sm:$0xf]
    %v390 = vld [vmem:[%s381 + $0x20] sm:$0xf]
    %v391 = vld [vmem:[%s381 + $0x24] sm:$0xf]
    %v392 = vld [vmem:[%s381 + $0x28] sm:$0xf]
    %v393 = vld [vmem:[%s381 + $0x2c] sm:$0xf]
    %v394 = vld [vmem:[%s381 + $0x30] sm:$0xf]
    %v395 = vld [vmem:[%s381 + $0x34] sm:$0xf]
    %v396 = vld [vmem:[%s381 + $0x38] sm:$0xf]
    %v397 = vld [vmem:[%s381 + $0x3c] sm:$0xf]
    %v398 = vpack.c.bf16 %v380, %v379
    %v415 = vunpack.c.l.b16 %v382
    %v416 = vunpack.c.l.b16 %v383
    %v417 = vunpack.c.l.b16 %v384
    %v418 = vunpack.c.l.b16 %v385
    %v419 = vunpack.c.l.b16 %v386
    %v420 = vunpack.c.l.b16 %v387
    %v421 = vunpack.c.l.b16 %v388
    %v422 = vunpack.c.l.b16 %v389
    %v423 = vunpack.c.l.b16 %v390
    %v424 = vunpack.c.l.b16 %v391
    %v425 = vunpack.c.l.b16 %v392
    %v426 = vunpack.c.l.b16 %v393
    %v427 = vunpack.c.l.b16 %v394
    %v428 = vunpack.c.l.b16 %v395
    %v429 = vunpack.c.l.b16 %v396
    %v430 = vunpack.c.l.b16 %v397
    %v431 = vpack.c.b16 %v416, %v415
    %v432 = vpack.c.b16 %v418, %v417
    %v433 = vpack.c.b16 %v420, %v419
    %v434 = vpack.c.b16 %v422, %v421
    %v435 = vpack.c.b16 %v424, %v423
    %v436 = vpack.c.b16 %v426, %v425
    %v437 = vpack.c.b16 %v428, %v427
    %v438 = vpack.c.b16 %v430, %v429
    %447 = vmatprep.subr.bf16.mxu0 0
    %448 = vmatpush1.bf16.msra.mxu0 %v438
    %449 = vmatprep.subr.bf16.mxu0 0
    %450 = vmatpush1.bf16.msra.mxu0 %v437
    %451 = vmatprep.subr.bf16.mxu0 0
    %452 = vmatpush1.bf16.msra.mxu0 %v436
    %453 = vmatprep.subr.bf16.mxu0 0
    %454 = vmatpush1.bf16.msra.mxu0 %v435
    %455 = vmatprep.subr.bf16.mxu0 0
    %456 = vmatpush1.bf16.msra.mxu0 %v434
    %457 = vmatprep.subr.bf16.mxu0 0
    %458 = vmatpush1.bf16.msra.mxu0 %v433
    %459 = vmatprep.subr.bf16.mxu0 0
    %460 = vmatpush1.bf16.msra.mxu0 %v432
    %461 = vmatprep.subr.bf16.mxu0 0
    %462 = vmatpush1.bf16.msra.mxu0 %v431
    %463 = vmatprep.subr.bf16.mxu0 0
    %464 = vmatpush2.bf16.msra.mxu0 0
    %465 = vmatprep.subr.bf16.mxu0 0
    %466 = vmatpush2.bf16.msra.mxu0 0
    %467 = vmatprep.subr.bf16.mxu0 0
    %468 = vmatpush2.bf16.msra.mxu0 0
    %469 = vmatprep.subr.bf16.mxu0 0
    %470 = vmatpush2.bf16.msra.mxu0 0
    %471 = vmatprep.subr.bf16.mxu0 0
    %472 = vmatpush2.bf16.msra.mxu0 0
    %473 = vmatprep.subr.bf16.mxu0 0
    %474 = vmatpush2.bf16.msra.mxu0 0
    %475 = vmatprep.subr.bf16.mxu0 0
    %476 = vmatpush2.bf16.msra.mxu0 0
    %477 = vmatprep.subr.bf16.mxu0 0
    %478 = vmatpush2.bf16.msra.mxu0 0
    %479 = vmatprep.mubr.bf16.mxu0 0
    %480 = vmatmul.mubr.bf16.gmra.mxu0 %v398
    %v481 = vpop.f32.mrf.mxu0
    %v482 = vadd.f32 0.0, %v481
    %v483 = vpop.f32.mrf.mxu0
    %v484 = vpop.f32.mrf.mxu0
    %v485 = vadd.f32 0.0, %v484
    %v486 = vpop.f32.mrf.mxu0
    %487 = vdwg.mxu0
    %488 = vadd.xlane.f32.xlu0 %v482
    %v489 = vpop.xlane.xlu0 %488
    %490 = vadd.xlane.f32.xlu0 %v485
    %v491 = vpop.xlane.xlu0 %490
    %v492 = vmul.f32 %v489, %v192
    %v493 = vmul.f32 %v491, %v192
    %v494 = vmul.f32 %v482, %v482
    %v495 = vmul.f32 %v485, %v485
    %496 = vadd.xlane.f32.xlu0 %v494
    %v497 = vpop.xlane.xlu0 %496
    %498 = vadd.xlane.f32.xlu0 %v495
    %v499 = vpop.xlane.xlu0 %498
    %v500 = vmul.f32 %v497, %v192
    %v501 = vmul.f32 %v499, %v192
    %v502 = vmul.f32 %v492, %v492
    %v503 = vmul.f32 %v493, %v493
    %v504 = vsub.f32 %v500, %v502
    %v505 = vsub.f32 %v501, %v503
    %v506 = vmax.f32 %v504, 0.0
    %v507 = vmax.f32 %v505, 0.0
    %v508 = vadd.f32 %v506, 1e-05
    %v509 = vadd.f32 %v507, 1e-05
    %v510 = vrsqrt.pop %v508
    %v511 = vrsqrt.pop %v509
    %v512 = vsub.f32 %v482, %v492
    %v513 = vsub.f32 %v485, %v493
    %v514 = vmul.f32 %v512, %v510
    %v515 = vmul.f32 %v513, %v511
    %v516 = vlaneseq
    %v517 = vshrl.u32 %v516, 7
    %v518 = vsub.s32 3, %v517
    %v519 = vrot.slane %v76, %v518
    %v520 = vmul.f32 %v514, %v519
    %v521 = vmul.f32 %v515, %v519
    %v522 = vlaneseq
    %v523 = vshrl.u32 %v522, 7
    %v524 = vsub.s32 5, %v523
    %v525 = vrot.slane %v76, %v524
    %v526 = vadd.f32 %v520, %v525
    %v527 = vadd.f32 %v521, %v525
    %v528 = vmax.f32 %v526, 0.0
    %v529 = vmax.f32 %v527, 0.0
    %v530 = vadd.f32 %v528, %v379
    %v531 = vadd.f32 %v529, %v380
    %s532 = scalar_lea.vmem [#allocation7], 128
    %v533 = vld [vmem:[%s532] sm:$0xf]
    %v534 = vld [vmem:[%s532 + $0x4] sm:$0xf]
    %v535 = vld [vmem:[%s532 + $0x8] sm:$0xf]
    %v536 = vld [vmem:[%s532 + $0xc] sm:$0xf]
    %v537 = vld [vmem:[%s532 + $0x10] sm:$0xf]
    %v538 = vld [vmem:[%s532 + $0x14] sm:$0xf]
    %v539 = vld [vmem:[%s532 + $0x18] sm:$0xf]
    %v540 = vld [vmem:[%s532 + $0x1c] sm:$0xf]
    %v541 = vld [vmem:[%s532 + $0x20] sm:$0xf]
    %v542 = vld [vmem:[%s532 + $0x24] sm:$0xf]
    %v543 = vld [vmem:[%s532 + $0x28] sm:$0xf]
    %v544 = vld [vmem:[%s532 + $0x2c] sm:$0xf]
    %v545 = vld [vmem:[%s532 + $0x30] sm:$0xf]
    %v546 = vld [vmem:[%s532 + $0x34] sm:$0xf]
    %v547 = vld [vmem:[%s532 + $0x38] sm:$0xf]
    %v548 = vld [vmem:[%s532 + $0x3c] sm:$0xf]
    %v549 = vpack.c.bf16 %v531, %v530
    %v550 = vlaneseq
    %v551 = vshrl.u32 %v550, 7
    %v552 = vsub.s32 6, %v551
    %v553 = vrot.slane %v76, %v552
    %v570 = vunpack.c.l.b16 %v533
    %v571 = vunpack.c.l.b16 %v534
    %v572 = vunpack.c.l.b16 %v535
    %v573 = vunpack.c.l.b16 %v536
    %v574 = vunpack.c.l.b16 %v537
    %v575 = vunpack.c.l.b16 %v538
    %v576 = vunpack.c.l.b16 %v539
    %v577 = vunpack.c.l.b16 %v540
    %v578 = vunpack.c.l.b16 %v541
    %v579 = vunpack.c.l.b16 %v542
    %v580 = vunpack.c.l.b16 %v543
    %v581 = vunpack.c.l.b16 %v544
    %v582 = vunpack.c.l.b16 %v545
    %v583 = vunpack.c.l.b16 %v546
    %v584 = vunpack.c.l.b16 %v547
    %v585 = vunpack.c.l.b16 %v548
    %v586 = vpack.c.b16 %v571, %v570
    %v587 = vpack.c.b16 %v573, %v572
    %v588 = vpack.c.b16 %v575, %v574
    %v589 = vpack.c.b16 %v577, %v576
    %v590 = vpack.c.b16 %v579, %v578
    %v591 = vpack.c.b16 %v581, %v580
    %v592 = vpack.c.b16 %v583, %v582
    %v593 = vpack.c.b16 %v585, %v584
    %602 = vmatprep.subr.bf16.mxu0 0
    %603 = vmatpush1.bf16.msra.mxu0 %v593
    %604 = vmatprep.subr.bf16.mxu0 0
    %605 = vmatpush1.bf16.msra.mxu0 %v592
    %606 = vmatprep.subr.bf16.mxu0 0
    %607 = vmatpush1.bf16.msra.mxu0 %v591
    %608 = vmatprep.subr.bf16.mxu0 0
    %609 = vmatpush1.bf16.msra.mxu0 %v590
    %610 = vmatprep.subr.bf16.mxu0 0
    %611 = vmatpush1.bf16.msra.mxu0 %v589
    %612 = vmatprep.subr.bf16.mxu0 0
    %613 = vmatpush1.bf16.msra.mxu0 %v588
    %614 = vmatprep.subr.bf16.mxu0 0
    %615 = vmatpush1.bf16.msra.mxu0 %v587
    %616 = vmatprep.subr.bf16.mxu0 0
    %617 = vmatpush1.bf16.msra.mxu0 %v586
    %618 = vmatprep.subr.bf16.mxu0 0
    %619 = vmatpush2.bf16.msra.mxu0 0
    %620 = vmatprep.subr.bf16.mxu0 0
    %621 = vmatpush2.bf16.msra.mxu0 0
    %622 = vmatprep.subr.bf16.mxu0 0
    %623 = vmatpush2.bf16.msra.mxu0 0
    %624 = vmatprep.subr.bf16.mxu0 0
    %625 = vmatpush2.bf16.msra.mxu0 0
    %626 = vmatprep.subr.bf16.mxu0 0
    %627 = vmatpush2.bf16.msra.mxu0 0
    %628 = vmatprep.subr.bf16.mxu0 0
    %629 = vmatpush2.bf16.msra.mxu0 0
    %630 = vmatprep.subr.bf16.mxu0 0
    %631 = vmatpush2.bf16.msra.mxu0 0
    %632 = vmatprep.subr.bf16.mxu0 0
    %633 = vmatpush2.bf16.msra.mxu0 0
    %634 = vmatprep.mubr.bf16.mxu0 0
    %635 = vmatmul.mubr.bf16.gmra.mxu0 %v549
    %v636 = vpop.f32.mrf.mxu0
    %v637 = vadd.f32 %v553, %v636
    %v638 = vpop.f32.mrf.mxu0
    %v639 = vpop.f32.mrf.mxu0
    %v640 = vadd.f32 %v553, %v639
    %v641 = vpop.f32.mrf.mxu0
    %642 = vdwg.mxu0
    %s643 = scalar_lea.vmem [#allocation7], 192
    %v644 = vld [vmem:[%s643] sm:$0xf]
    %v645 = vld [vmem:[%s643 + $0x4] sm:$0xf]
    %v646 = vld [vmem:[%s643 + $0x8] sm:$0xf]
    %v647 = vld [vmem:[%s643 + $0xc] sm:$0xf]
    %v648 = vld [vmem:[%s643 + $0x10] sm:$0xf]
    %v649 = vld [vmem:[%s643 + $0x14] sm:$0xf]
    %v650 = vld [vmem:[%s643 + $0x18] sm:$0xf]
    %v651 = vld [vmem:[%s643 + $0x1c] sm:$0xf]
    %v652 = vld [vmem:[%s643 + $0x20] sm:$0xf]
    %v653 = vld [vmem:[%s643 + $0x24] sm:$0xf]
    %v654 = vld [vmem:[%s643 + $0x28] sm:$0xf]
    %v655 = vld [vmem:[%s643 + $0x2c] sm:$0xf]
    %v656 = vld [vmem:[%s643 + $0x30] sm:$0xf]
    %v657 = vld [vmem:[%s643 + $0x34] sm:$0xf]
    %v658 = vld [vmem:[%s643 + $0x38] sm:$0xf]
    %v659 = vld [vmem:[%s643 + $0x3c] sm:$0xf]
    %v660 = vpack.c.bf16 %v640, %v637
    %v661 = vlaneseq
    %v662 = vshrl.u32 %v661, 7
    %v663 = vsub.s32 7, %v662
    %v664 = vrot.slane %v76, %v663
    %v681 = vunpack.c.l.b16 %v644
    %v682 = vunpack.c.l.b16 %v645
    %v683 = vunpack.c.l.b16 %v646
    %v684 = vunpack.c.l.b16 %v647
    %v685 = vunpack.c.l.b16 %v648
    %v686 = vunpack.c.l.b16 %v649
    %v687 = vunpack.c.l.b16 %v650
    %v688 = vunpack.c.l.b16 %v651
    %v689 = vunpack.c.l.b16 %v652
    %v690 = vunpack.c.l.b16 %v653
    %v691 = vunpack.c.l.b16 %v654
    %v692 = vunpack.c.l.b16 %v655
    %v693 = vunpack.c.l.b16 %v656
    %v694 = vunpack.c.l.b16 %v657
    %v695 = vunpack.c.l.b16 %v658
    %v696 = vunpack.c.l.b16 %v659
    %v697 = vpack.c.b16 %v682, %v681
    %v698 = vpack.c.b16 %v684, %v683
    %v699 = vpack.c.b16 %v686, %v685
    %v700 = vpack.c.b16 %v688, %v687
    %v701 = vpack.c.b16 %v690, %v689
    %v702 = vpack.c.b16 %v692, %v691
    %v703 = vpack.c.b16 %v694, %v693
    %v704 = vpack.c.b16 %v696, %v695
    %713 = vmatprep.subr.bf16.mxu0 0
    %714 = vmatpush1.bf16.msra.mxu0 %v704
    %715 = vmatprep.subr.bf16.mxu0 0
    %716 = vmatpush1.bf16.msra.mxu0 %v703
    %717 = vmatprep.subr.bf16.mxu0 0
    %718 = vmatpush1.bf16.msra.mxu0 %v702
    %719 = vmatprep.subr.bf16.mxu0 0
    %720 = vmatpush1.bf16.msra.mxu0 %v701
    %721 = vmatprep.subr.bf16.mxu0 0
    %722 = vmatpush1.bf16.msra.mxu0 %v700
    %723 = vmatprep.subr.bf16.mxu0 0
    %724 = vmatpush1.bf16.msra.mxu0 %v699
    %725 = vmatprep.subr.bf16.mxu0 0
    %726 = vmatpush1.bf16.msra.mxu0 %v698
    %727 = vmatprep.subr.bf16.mxu0 0
    %728 = vmatpush1.bf16.msra.mxu0 %v697
    %729 = vmatprep.subr.bf16.mxu0 0
    %730 = vmatpush2.bf16.msra.mxu0 0
    %731 = vmatprep.subr.bf16.mxu0 0
    %732 = vmatpush2.bf16.msra.mxu0 0
    %733 = vmatprep.subr.bf16.mxu0 0
    %734 = vmatpush2.bf16.msra.mxu0 0
    %735 = vmatprep.subr.bf16.mxu0 0
    %736 = vmatpush2.bf16.msra.mxu0 0
    %737 = vmatprep.subr.bf16.mxu0 0
    %738 = vmatpush2.bf16.msra.mxu0 0
    %739 = vmatprep.subr.bf16.mxu0 0
    %740 = vmatpush2.bf16.msra.mxu0 0
    %741 = vmatprep.subr.bf16.mxu0 0
    %742 = vmatpush2.bf16.msra.mxu0 0
    %743 = vmatprep.subr.bf16.mxu0 0
    %744 = vmatpush2.bf16.msra.mxu0 0
    %745 = vmatprep.mubr.bf16.mxu0 0
    %746 = vmatmul.mubr.bf16.gmra.mxu0 %v660
    %v747 = vpop.f32.mrf.mxu0
    %v748 = vadd.f32 %v664, %v747
    %v749 = vpop.f32.mrf.mxu0
    %v750 = vpop.f32.mrf.mxu0
    %v751 = vadd.f32 %v664, %v750
    %v752 = vpop.f32.mrf.mxu0
    %753 = vdwg.mxu0
    %754 = vst [vmem:[#allocation10] sm:$0xff] %v748
    %755 = vst [vmem:[#allocation10 + $0x8] sm:$0xff] %v751
    %s756 = scalar_lea.vmem [#allocation8], 8
    %v757 = vld [vmem:[%s756] sm:$0xff]
    %s758 = scalar_lea.vmem [#allocation5], 64
    %v759 = vld [vmem:[%s758] sm:$0xf]
    %v760 = vld [vmem:[%s758 + $0x4] sm:$0xf]
    %v761 = vld [vmem:[%s758 + $0x8] sm:$0xf]
    %v762 = vld [vmem:[%s758 + $0xc] sm:$0xf]
    %v763 = vld [vmem:[%s758 + $0x10] sm:$0xf]
    %v764 = vld [vmem:[%s758 + $0x14] sm:$0xf]
    %v765 = vld [vmem:[%s758 + $0x18] sm:$0xf]
    %v766 = vld [vmem:[%s758 + $0x1c] sm:$0xf]
    %v767 = vld [vmem:[%s758 + $0x20] sm:$0xf]
    %v768 = vld [vmem:[%s758 + $0x24] sm:$0xf]
    %v769 = vld [vmem:[%s758 + $0x28] sm:$0xf]
    %v770 = vld [vmem:[%s758 + $0x2c] sm:$0xf]
    %v771 = vld [vmem:[%s758 + $0x30] sm:$0xf]
    %v772 = vld [vmem:[%s758 + $0x34] sm:$0xf]
    %v773 = vld [vmem:[%s758 + $0x38] sm:$0xf]
    %v774 = vld [vmem:[%s758 + $0x3c] sm:$0xf]
    %v791 = vunpack.c.l.b16 %v759
    %v792 = vunpack.c.l.b16 %v760
    %v793 = vunpack.c.l.b16 %v761
    %v794 = vunpack.c.l.b16 %v762
    %v795 = vunpack.c.l.b16 %v763
    %v796 = vunpack.c.l.b16 %v764
    %v797 = vunpack.c.l.b16 %v765
    %v798 = vunpack.c.l.b16 %v766
    %v799 = vunpack.c.l.b16 %v767
    %v800 = vunpack.c.l.b16 %v768
    %v801 = vunpack.c.l.b16 %v769
    %v802 = vunpack.c.l.b16 %v770
    %v803 = vunpack.c.l.b16 %v771
    %v804 = vunpack.c.l.b16 %v772
    %v805 = vunpack.c.l.b16 %v773
    %v806 = vunpack.c.l.b16 %v774
    %v807 = vpack.c.b16 %v792, %v791
    %v808 = vpack.c.b16 %v794, %v793
    %v809 = vpack.c.b16 %v796, %v795
    %v810 = vpack.c.b16 %v798, %v797
    %v811 = vpack.c.b16 %v800, %v799
    %v812 = vpack.c.b16 %v802, %v801
    %v813 = vpack.c.b16 %v804, %v803
    %v814 = vpack.c.b16 %v806, %v805
    %823 = vmatprep.subr.bf16.mxu0 0
    %824 = vmatpush1.bf16.msra.mxu0 %v814
    %825 = vmatprep.subr.bf16.mxu0 0
    %826 = vmatpush1.bf16.msra.mxu0 %v813
    %827 = vmatprep.subr.bf16.mxu0 0
    %828 = vmatpush1.bf16.msra.mxu0 %v812
    %829 = vmatprep.subr.bf16.mxu0 0
    %830 = vmatpush1.bf16.msra.mxu0 %v811
    %831 = vmatprep.subr.bf16.mxu0 0
    %832 = vmatpush1.bf16.msra.mxu0 %v810
    %833 = vmatprep.subr.bf16.mxu0 0
    %834 = vmatpush1.bf16.msra.mxu0 %v809
    %835 = vmatprep.subr.bf16.mxu0 0
    %836 = vmatpush1.bf16.msra.mxu0 %v808
    %837 = vmatprep.subr.bf16.mxu0 0
    %838 = vmatpush1.bf16.msra.mxu0 %v807
    %839 = vmatprep.subr.bf16.mxu0 0
    %840 = vmatpush2.bf16.msra.mxu0 0
    %841 = vmatprep.subr.bf16.mxu0 0
    %842 = vmatpush2.bf16.msra.mxu0 0
    %843 = vmatprep.subr.bf16.mxu0 0
    %844 = vmatpush2.bf16.msra.mxu0 0
    %845 = vmatprep.subr.bf16.mxu0 0
    %846 = vmatpush2.bf16.msra.mxu0 0
    %847 = vmatprep.subr.bf16.mxu0 0
    %848 = vmatpush2.bf16.msra.mxu0 0
    %849 = vmatprep.subr.bf16.mxu0 0
    %850 = vmatpush2.bf16.msra.mxu0 0
    %851 = vmatprep.subr.bf16.mxu0 0
    %852 = vmatpush2.bf16.msra.mxu0 0
    %853 = vmatprep.subr.bf16.mxu0 0
    %854 = vmatpush2.bf16.msra.mxu0 0
    %855 = vmatprep.mubr.bf16.mxu0 0
    %856 = vmatmul.mubr.bf16.gmra.mxu0 %v97
    %v857 = vpop.f32.mrf.mxu0
    %v858 = vadd.f32 0.0, %v857
    %v859 = vpop.f32.mrf.mxu0
    %v860 = vpop.f32.mrf.mxu0
    %v861 = vadd.f32 0.0, %v860
    %v862 = vpop.f32.mrf.mxu0
    %863 = vdwg.mxu0
    %864 = vadd.xlane.f32.xlu0 %v858
    %v865 = vpop.xlane.xlu0 %864
    %866 = vadd.xlane.f32.xlu0 %v861
    %v867 = vpop.xlane.xlu0 %866
    %v868 = vmul.f32 %v865, %v192
    %v869 = vmul.f32 %v867, %v192
    %v870 = vmul.f32 %v858, %v858
    %v871 = vmul.f32 %v861, %v861
    %872 = vadd.xlane.f32.xlu0 %v870
    %v873 = vpop.xlane.xlu0 %872
    %874 = vadd.xlane.f32.xlu0 %v871
    %v875 = vpop.xlane.xlu0 %874
    %v876 = vmul.f32 %v873, %v192
    %v877 = vmul.f32 %v875, %v192
    %v878 = vmul.f32 %v868, %v868
    %v879 = vmul.f32 %v869, %v869
    %v880 = vsub.f32 %v876, %v878
    %v881 = vsub.f32 %v877, %v879
    %v882 = vmax.f32 %v880, 0.0
    %v883 = vmax.f32 %v881, 0.0
    %v884 = vadd.f32 %v882, 1e-05
    %v885 = vadd.f32 %v883, 1e-05
    %v886 = vrsqrt.pop %v884
    %v887 = vrsqrt.pop %v885
    %v888 = vsub.f32 %v858, %v868
    %v889 = vsub.f32 %v861, %v869
    %v890 = vmul.f32 %v888, %v886
    %v891 = vmul.f32 %v889, %v887
    %v892 = vlaneseq
    %v893 = vshrl.u32 %v892, 7
    %v894 = vsub.s32 0, %v893
    %v895 = vrot.slane %v757, %v894
    %v896 = vmul.f32 %v890, %v895
    %v897 = vmul.f32 %v891, %v895
    %v898 = vlaneseq
    %v899 = vshrl.u32 %v898, 7
    %v900 = vsub.s32 1, %v899
    %v901 = vrot.slane %v757, %v900
    %v902 = vadd.f32 %v896, %v901
    %v903 = vadd.f32 %v897, %v901
    %v904 = vmax.f32 %v902, 0.0
    %v905 = vmax.f32 %v903, 0.0
    %s906 = scalar_lea.vmem [#allocation7], 256
    %v907 = vld [vmem:[%s906] sm:$0xf]
    %v908 = vld [vmem:[%s906 + $0x4] sm:$0xf]
    %v909 = vld [vmem:[%s906 + $0x8] sm:$0xf]
    %v910 = vld [vmem:[%s906 + $0xc] sm:$0xf]
    %v911 = vld [vmem:[%s906 + $0x10] sm:$0xf]
    %v912 = vld [vmem:[%s906 + $0x14] sm:$0xf]
    %v913 = vld [vmem:[%s906 + $0x18] sm:$0xf]
    %v914 = vld [vmem:[%s906 + $0x1c] sm:$0xf]
    %v915 = vld [vmem:[%s906 + $0x20] sm:$0xf]
    %v916 = vld [vmem:[%s906 + $0x24] sm:$0xf]
    %v917 = vld [vmem:[%s906 + $0x28] sm:$0xf]
    %v918 = vld [vmem:[%s906 + $0x2c] sm:$0xf]
    %v919 = vld [vmem:[%s906 + $0x30] sm:$0xf]
    %v920 = vld [vmem:[%s906 + $0x34] sm:$0xf]
    %v921 = vld [vmem:[%s906 + $0x38] sm:$0xf]
    %v922 = vld [vmem:[%s906 + $0x3c] sm:$0xf]
    %v923 = vpack.c.bf16 %v905, %v904
    %v940 = vunpack.c.l.b16 %v907
    %v941 = vunpack.c.l.b16 %v908
    %v942 = vunpack.c.l.b16 %v909
    %v943 = vunpack.c.l.b16 %v910
    %v944 = vunpack.c.l.b16 %v911
    %v945 = vunpack.c.l.b16 %v912
    %v946 = vunpack.c.l.b16 %v913
    %v947 = vunpack.c.l.b16 %v914
    %v948 = vunpack.c.l.b16 %v915
    %v949 = vunpack.c.l.b16 %v916
    %v950 = vunpack.c.l.b16 %v917
    %v951 = vunpack.c.l.b16 %v918
    %v952 = vunpack.c.l.b16 %v919
    %v953 = vunpack.c.l.b16 %v920
    %v954 = vunpack.c.l.b16 %v921
    %v955 = vunpack.c.l.b16 %v922
    %v956 = vpack.c.b16 %v941, %v940
    %v957 = vpack.c.b16 %v943, %v942
    %v958 = vpack.c.b16 %v945, %v944
    %v959 = vpack.c.b16 %v947, %v946
    %v960 = vpack.c.b16 %v949, %v948
    %v961 = vpack.c.b16 %v951, %v950
    %v962 = vpack.c.b16 %v953, %v952
    %v963 = vpack.c.b16 %v955, %v954
    %972 = vmatprep.subr.bf16.mxu0 0
    %973 = vmatpush1.bf16.msra.mxu0 %v963
    %974 = vmatprep.subr.bf16.mxu0 0
    %975 = vmatpush1.bf16.msra.mxu0 %v962
    %976 = vmatprep.subr.bf16.mxu0 0
    %977 = vmatpush1.bf16.msra.mxu0 %v961
    %978 = vmatprep.subr.bf16.mxu0 0
    %979 = vmatpush1.bf16.msra.mxu0 %v960
    %980 = vmatprep.subr.bf16.mxu0 0
    %981 = vmatpush1.bf16.msra.mxu0 %v959
    %982 = vmatprep.subr.bf16.mxu0 0
    %983 = vmatpush1.bf16.msra.mxu0 %v958
    %984 = vmatprep.subr.bf16.mxu0 0
    %985 = vmatpush1.bf16.msra.mxu0 %v957
    %986 = vmatprep.subr.bf16.mxu0 0
    %987 = vmatpush1.bf16.msra.mxu0 %v956
    %988 = vmatprep.subr.bf16.mxu0 0
    %989 = vmatpush2.bf16.msra.mxu0 0
    %990 = vmatprep.subr.bf16.mxu0 0
    %991 = vmatpush2.bf16.msra.mxu0 0
    %992 = vmatprep.subr.bf16.mxu0 0
    %993 = vmatpush2.bf16.msra.mxu0 0
    %994 = vmatprep.subr.bf16.mxu0 0
    %995 = vmatpush2.bf16.msra.mxu0 0
    %996 = vmatprep.subr.bf16.mxu0 0
    %997 = vmatpush2.bf16.msra.mxu0 0
    %998 = vmatprep.subr.bf16.mxu0 0
    %999 = vmatpush2.bf16.msra.mxu0 0
    %1000 = vmatprep.subr.bf16.mxu0 0
    %1001 = vmatpush2.bf16.msra.mxu0 0
    %1002 = vmatprep.subr.bf16.mxu0 0
    %1003 = vmatpush2.bf16.msra.mxu0 0
    %1004 = vmatprep.mubr.bf16.mxu0 0
    %1005 = vmatmul.mubr.bf16.gmra.mxu0 %v923
    %v1006 = vpop.f32.mrf.mxu0
    %v1007 = vadd.f32 0.0, %v1006
    %v1008 = vpop.f32.mrf.mxu0
    %v1009 = vpop.f32.mrf.mxu0
    %v1010 = vadd.f32 0.0, %v1009
    %v1011 = vpop.f32.mrf.mxu0
    %1012 = vdwg.mxu0
    %1013 = vadd.xlane.f32.xlu0 %v1007
    %v1014 = vpop.xlane.xlu0 %1013
    %1015 = vadd.xlane.f32.xlu0 %v1010
    %v1016 = vpop.xlane.xlu0 %1015
    %v1017 = vmul.f32 %v1014, %v192
    %v1018 = vmul.f32 %v1016, %v192
    %v1019 = vmul.f32 %v1007, %v1007
    %v1020 = vmul.f32 %v1010, %v1010
    %1021 = vadd.xlane.f32.xlu0 %v1019
    %v1022 = vpop.xlane.xlu0 %1021
    %1023 = vadd.xlane.f32.xlu0 %v1020
    %v1024 = vpop.xlane.xlu0 %1023
    %v1025 = vmul.f32 %v1022, %v192
    %v1026 = vmul.f32 %v1024, %v192
    %v1027 = vmul.f32 %v1017, %v1017
    %v1028 = vmul.f32 %v1018, %v1018
    %v1029 = vsub.f32 %v1025, %v1027
    %v1030 = vsub.f32 %v1026, %v1028
    %v1031 = vmax.f32 %v1029, 0.0
    %v1032 = vmax.f32 %v1030, 0.0
    %v1033 = vadd.f32 %v1031, 1e-05
    %v1034 = vadd.f32 %v1032, 1e-05
    %v1035 = vrsqrt.pop %v1033
    %v1036 = vrsqrt.pop %v1034
    %v1037 = vsub.f32 %v1007, %v1017
    %v1038 = vsub.f32 %v1010, %v1018
    %v1039 = vmul.f32 %v1037, %v1035
    %v1040 = vmul.f32 %v1038, %v1036
    %v1041 = vlaneseq
    %v1042 = vshrl.u32 %v1041, 7
    %v1043 = vsub.s32 2, %v1042
    %v1044 = vrot.slane %v757, %v1043
    %v1045 = vmul.f32 %v1039, %v1044
    %v1046 = vmul.f32 %v1040, %v1044
    %v1047 = vlaneseq
    %v1048 = vshrl.u32 %v1047, 7
    %v1049 = vsub.s32 4, %v1048
    %v1050 = vrot.slane %v757, %v1049
    %v1051 = vadd.f32 %v1045, %v1050
    %v1052 = vadd.f32 %v1046, %v1050
    %v1053 = vmax.f32 %v1051, 0.0
    %v1054 = vmax.f32 %v1052, 0.0
    %v1055 = vadd.f32 %v1053, %v904
    %v1056 = vadd.f32 %v1054, %v905
    %s1057 = scalar_lea.vmem [#allocation7], 320
    %v1058 = vld [vmem:[%s1057] sm:$0xf]
    %v1059 = vld [vmem:[%s1057 + $0x4] sm:$0xf]
    %v1060 = vld [vmem:[%s1057 + $0x8] sm:$0xf]
    %v1061 = vld [vmem:[%s1057 + $0xc] sm:$0xf]
    %v1062 = vld [vmem:[%s1057 + $0x10] sm:$0xf]
    %v1063 = vld [vmem:[%s1057 + $0x14] sm:$0xf]
    %v1064 = vld [vmem:[%s1057 + $0x18] sm:$0xf]
    %v1065 = vld [vmem:[%s1057 + $0x1c] sm:$0xf]
    %v1066 = vld [vmem:[%s1057 + $0x20] sm:$0xf]
    %v1067 = vld [vmem:[%s1057 + $0x24] sm:$0xf]
    %v1068 = vld [vmem:[%s1057 + $0x28] sm:$0xf]
    %v1069 = vld [vmem:[%s1057 + $0x2c] sm:$0xf]
    %v1070 = vld [vmem:[%s1057 + $0x30] sm:$0xf]
    %v1071 = vld [vmem:[%s1057 + $0x34] sm:$0xf]
    %v1072 = vld [vmem:[%s1057 + $0x38] sm:$0xf]
    %v1073 = vld [vmem:[%s1057 + $0x3c] sm:$0xf]
    %v1074 = vpack.c.bf16 %v1056, %v1055
    %v1091 = vunpack.c.l.b16 %v1058
    %v1092 = vunpack.c.l.b16 %v1059
    %v1093 = vunpack.c.l.b16 %v1060
    %v1094 = vunpack.c.l.b16 %v1061
    %v1095 = vunpack.c.l.b16 %v1062
    %v1096 = vunpack.c.l.b16 %v1063
    %v1097 = vunpack.c.l.b16 %v1064
    %v1098 = vunpack.c.l.b16 %v1065
    %v1099 = vunpack.c.l.b16 %v1066
    %v1100 = vunpack.c.l.b16 %v1067
    %v1101 = vunpack.c.l.b16 %v1068
    %v1102 = vunpack.c.l.b16 %v1069
    %v1103 = vunpack.c.l.b16 %v1070
    %v1104 = vunpack.c.l.b16 %v1071
    %v1105 = vunpack.c.l.b16 %v1072
    %v1106 = vunpack.c.l.b16 %v1073
    %v1107 = vpack.c.b16 %v1092, %v1091
    %v1108 = vpack.c.b16 %v1094, %v1093
    %v1109 = vpack.c.b16 %v1096, %v1095
    %v1110 = vpack.c.b16 %v1098, %v1097
    %v1111 = vpack.c.b16 %v1100, %v1099
    %v1112 = vpack.c.b16 %v1102, %v1101
    %v1113 = vpack.c.b16 %v1104, %v1103
    %v1114 = vpack.c.b16 %v1106, %v1105
    %1123 = vmatprep.subr.bf16.mxu0 0
    %1124 = vmatpush1.bf16.msra.mxu0 %v1114
    %1125 = vmatprep.subr.bf16.mxu0 0
    %1126 = vmatpush1.bf16.msra.mxu0 %v1113
    %1127 = vmatprep.subr.bf16.mxu0 0
    %1128 = vmatpush1.bf16.msra.mxu0 %v1112
    %1129 = vmatprep.subr.bf16.mxu0 0
    %1130 = vmatpush1.bf16.msra.mxu0 %v1111
    %1131 = vmatprep.subr.bf16.mxu0 0
    %1132 = vmatpush1.bf16.msra.mxu0 %v1110
    %1133 = vmatprep.subr.bf16.mxu0 0
    %1134 = vmatpush1.bf16.msra.mxu0 %v1109
    %1135 = vmatprep.subr.bf16.mxu0 0
    %1136 = vmatpush1.bf16.msra.mxu0 %v1108
    %1137 = vmatprep.subr.bf16.mxu0 0
    %1138 = vmatpush1.bf16.msra.mxu0 %v1107
    %1139 = vmatprep.subr.bf16.mxu0 0
    %1140 = vmatpush2.bf16.msra.mxu0 0
    %1141 = vmatprep.subr.bf16.mxu0 0
    %1142 = vmatpush2.bf16.msra.mxu0 0
    %1143 = vmatprep.subr.bf16.mxu0 0
    %1144 = vmatpush2.bf16.msra.mxu0 0
    %1145 = vmatprep.subr.bf16.mxu0 0
    %1146 = vmatpush2.bf16.msra.mxu0 0
    %1147 = vmatprep.subr.bf16.mxu0 0
    %1148 = vmatpush2.bf16.msra.mxu0 0
    %1149 = vmatprep.subr.bf16.mxu0 0
    %1150 = vmatpush2.bf16.msra.mxu0 0
    %1151 = vmatprep.subr.bf16.mxu0 0
    %1152 = vmatpush2.bf16.msra.mxu0 0
    %1153 = vmatprep.subr.bf16.mxu0 0
    %1154 = vmatpush2.bf16.msra.mxu0 0
    %1155 = vmatprep.mubr.bf16.mxu0 0
    %1156 = vmatmul.mubr.bf16.gmra.mxu0 %v1074
    %v1157 = vpop.f32.mrf.mxu0
    %v1158 = vadd.f32 0.0, %v1157
    %v1159 = vpop.f32.mrf.mxu0
    %v1160 = vpop.f32.mrf.mxu0
    %v1161 = vadd.f32 0.0, %v1160
    %v1162 = vpop.f32.mrf.mxu0
    %1163 = vdwg.mxu0
    %1164 = vadd.xlane.f32.xlu0 %v1158
    %v1165 = vpop.xlane.xlu0 %1164
    %1166 = vadd.xlane.f32.xlu0 %v1161
    %v1167 = vpop.xlane.xlu0 %1166
    %v1168 = vmul.f32 %v1165, %v192
    %v1169 = vmul.f32 %v1167, %v192
    %v1170 = vmul.f32 %v1158, %v1158
    %v1171 = vmul.f32 %v1161, %v1161
    %1172 = vadd.xlane.f32.xlu0 %v1170
    %v1173 = vpop.xlane.xlu0 %1172
    %1174 = vadd.xlane.f32.xlu0 %v1171
    %v1175 = vpop.xlane.xlu0 %1174
    %v1176 = vmul.f32 %v1173, %v192
    %v1177 = vmul.f32 %v1175, %v192
    %v1178 = vmul.f32 %v1168, %v1168
    %v1179 = vmul.f32 %v1169, %v1169
    %v1180 = vsub.f32 %v1176, %v1178
    %v1181 = vsub.f32 %v1177, %v1179
    %v1182 = vmax.f32 %v1180, 0.0
    %v1183 = vmax.f32 %v1181, 0.0
    %v1184 = vadd.f32 %v1182, 1e-05
    %v1185 = vadd.f32 %v1183, 1e-05
    %v1186 = vrsqrt.pop %v1184
    %v1187 = vrsqrt.pop %v1185
    %v1188 = vsub.f32 %v1158, %v1168
    %v1189 = vsub.f32 %v1161, %v1169
    %v1190 = vmul.f32 %v1188, %v1186
    %v1191 = vmul.f32 %v1189, %v1187
    %v1192 = vlaneseq
    %v1193 = vshrl.u32 %v1192, 7
    %v1194 = vsub.s32 3, %v1193
    %v1195 = vrot.slane %v757, %v1194
    %v1196 = vmul.f32 %v1190, %v1195
    %v1197 = vmul.f32 %v1191, %v1195
    %v1198 = vlaneseq
    %v1199 = vshrl.u32 %v1198, 7
    %v1200 = vsub.s32 5, %v1199
    %v1201 = vrot.slane %v757, %v1200
    %v1202 = vadd.f32 %v1196, %v1201
    %v1203 = vadd.f32 %v1197, %v1201
    %v1204 = vmax.f32 %v1202, 0.0
    %v1205 = vmax.f32 %v1203, 0.0
    %v1206 = vadd.f32 %v1204, %v1055
    %v1207 = vadd.f32 %v1205, %v1056
    %s1208 = scalar_lea.vmem [#allocation7], 384
    %v1209 = vld [vmem:[%s1208] sm:$0xf]
    %v1210 = vld [vmem:[%s1208 + $0x4] sm:$0xf]
    %v1211 = vld [vmem:[%s1208 + $0x8] sm:$0xf]
    %v1212 = vld [vmem:[%s1208 + $0xc] sm:$0xf]
    %v1213 = vld [vmem:[%s1208 + $0x10] sm:$0xf]
    %v1214 = vld [vmem:[%s1208 + $0x14] sm:$0xf]
    %v1215 = vld [vmem:[%s1208 + $0x18] sm:$0xf]
    %v1216 = vld [vmem:[%s1208 + $0x1c] sm:$0xf]
    %v1217 = vld [vmem:[%s1208 + $0x20] sm:$0xf]
    %v1218 = vld [vmem:[%s1208 + $0x24] sm:$0xf]
    %v1219 = vld [vmem:[%s1208 + $0x28] sm:$0xf]
    %v1220 = vld [vmem:[%s1208 + $0x2c] sm:$0xf]
    %v1221 = vld [vmem:[%s1208 + $0x30] sm:$0xf]
    %v1222 = vld [vmem:[%s1208 + $0x34] sm:$0xf]
    %v1223 = vld [vmem:[%s1208 + $0x38] sm:$0xf]
    %v1224 = vld [vmem:[%s1208 + $0x3c] sm:$0xf]
    %v1225 = vpack.c.bf16 %v1207, %v1206
    %v1226 = vlaneseq
    %v1227 = vshrl.u32 %v1226, 7
    %v1228 = vsub.s32 6, %v1227
    %v1229 = vrot.slane %v757, %v1228
    %v1246 = vunpack.c.l.b16 %v1209
    %v1247 = vunpack.c.l.b16 %v1210
    %v1248 = vunpack.c.l.b16 %v1211
    %v1249 = vunpack.c.l.b16 %v1212
    %v1250 = vunpack.c.l.b16 %v1213
    %v1251 = vunpack.c.l.b16 %v1214
    %v1252 = vunpack.c.l.b16 %v1215
    %v1253 = vunpack.c.l.b16 %v1216
    %v1254 = vunpack.c.l.b16 %v1217
    %v1255 = vunpack.c.l.b16 %v1218
    %v1256 = vunpack.c.l.b16 %v1219
    %v1257 = vunpack.c.l.b16 %v1220
    %v1258 = vunpack.c.l.b16 %v1221
    %v1259 = vunpack.c.l.b16 %v1222
    %v1260 = vunpack.c.l.b16 %v1223
    %v1261 = vunpack.c.l.b16 %v1224
    %v1262 = vpack.c.b16 %v1247, %v1246
    %v1263 = vpack.c.b16 %v1249, %v1248
    %v1264 = vpack.c.b16 %v1251, %v1250
    %v1265 = vpack.c.b16 %v1253, %v1252
    %v1266 = vpack.c.b16 %v1255, %v1254
    %v1267 = vpack.c.b16 %v1257, %v1256
    %v1268 = vpack.c.b16 %v1259, %v1258
    %v1269 = vpack.c.b16 %v1261, %v1260
    %1278 = vmatprep.subr.bf16.mxu0 0
    %1279 = vmatpush1.bf16.msra.mxu0 %v1269
    %1280 = vmatprep.subr.bf16.mxu0 0
    %1281 = vmatpush1.bf16.msra.mxu0 %v1268
    %1282 = vmatprep.subr.bf16.mxu0 0
    %1283 = vmatpush1.bf16.msra.mxu0 %v1267
    %1284 = vmatprep.subr.bf16.mxu0 0
    %1285 = vmatpush1.bf16.msra.mxu0 %v1266
    %1286 = vmatprep.subr.bf16.mxu0 0
    %1287 = vmatpush1.bf16.msra.mxu0 %v1265
    %1288 = vmatprep.subr.bf16.mxu0 0
    %1289 = vmatpush1.bf16.msra.mxu0 %v1264
    %1290 = vmatprep.subr.bf16.mxu0 0
    %1291 = vmatpush1.bf16.msra.mxu0 %v1263
    %1292 = vmatprep.subr.bf16.mxu0 0
    %1293 = vmatpush1.bf16.msra.mxu0 %v1262
    %1294 = vmatprep.subr.bf16.mxu0 0
    %1295 = vmatpush2.bf16.msra.mxu0 0
    %1296 = vmatprep.subr.bf16.mxu0 0
    %1297 = vmatpush2.bf16.msra.mxu0 0
    %1298 = vmatprep.subr.bf16.mxu0 0
    %1299 = vmatpush2.bf16.msra.mxu0 0
    %1300 = vmatprep.subr.bf16.mxu0 0
    %1301 = vmatpush2.bf16.msra.mxu0 0
    %1302 = vmatprep.subr.bf16.mxu0 0
    %1303 = vmatpush2.bf16.msra.mxu0 0
    %1304 = vmatprep.subr.bf16.mxu0 0
    %1305 = vmatpush2.bf16.msra.mxu0 0
    %1306 = vmatprep.subr.bf16.mxu0 0
    %1307 = vmatpush2.bf16.msra.mxu0 0
    %1308 = vmatprep.subr.bf16.mxu0 0
    %1309 = vmatpush2.bf16.msra.mxu0 0
    %1310 = vmatprep.mubr.bf16.mxu0 0
    %1311 = vmatmul.mubr.bf16.gmra.mxu0 %v1225
    %v1312 = vpop.f32.mrf.mxu0
    %v1313 = vadd.f32 %v1229, %v1312
    %v1314 = vpop.f32.mrf.mxu0
    %v1315 = vpop.f32.mrf.mxu0
    %v1316 = vadd.f32 %v1229, %v1315
    %v1317 = vpop.f32.mrf.mxu0
    %1318 = vdwg.mxu0
    %s1319 = scalar_lea.vmem [#allocation7], 448
    %v1320 = vld [vmem:[%s1319] sm:$0xf]
    %v1321 = vld [vmem:[%s1319 + $0x4] sm:$0xf]
    %v1322 = vld [vmem:[%s1319 + $0x8] sm:$0xf]
    %v1323 = vld [vmem:[%s1319 + $0xc] sm:$0xf]
    %v1324 = vld [vmem:[%s1319 + $0x10] sm:$0xf]
    %v1325 = vld [vmem:[%s1319 + $0x14] sm:$0xf]
    %v1326 = vld [vmem:[%s1319 + $0x18] sm:$0xf]
    %v1327 = vld [vmem:[%s1319 + $0x1c] sm:$0xf]
    %v1328 = vld [vmem:[%s1319 + $0x20] sm:$0xf]
    %v1329 = vld [vmem:[%s1319 + $0x24] sm:$0xf]
    %v1330 = vld [vmem:[%s1319 + $0x28] sm:$0xf]
    %v1331 = vld [vmem:[%s1319 + $0x2c] sm:$0xf]
    %v1332 = vld [vmem:[%s1319 + $0x30] sm:$0xf]
    %v1333 = vld [vmem:[%s1319 + $0x34] sm:$0xf]
    %v1334 = vld [vmem:[%s1319 + $0x38] sm:$0xf]
    %v1335 = vld [vmem:[%s1319 + $0x3c] sm:$0xf]
    %v1336 = vpack.c.bf16 %v1316, %v1313
    %v1337 = vlaneseq
    %v1338 = vshrl.u32 %v1337, 7
    %v1339 = vsub.s32 7, %v1338
    %v1340 = vrot.slane %v757, %v1339
    %v1357 = vunpack.c.l.b16 %v1320
    %v1358 = vunpack.c.l.b16 %v1321
    %v1359 = vunpack.c.l.b16 %v1322
    %v1360 = vunpack.c.l.b16 %v1323
    %v1361 = vunpack.c.l.b16 %v1324
    %v1362 = vunpack.c.l.b16 %v1325
    %v1363 = vunpack.c.l.b16 %v1326
    %v1364 = vunpack.c.l.b16 %v1327
    %v1365 = vunpack.c.l.b16 %v1328
    %v1366 = vunpack.c.l.b16 %v1329
    %v1367 = vunpack.c.l.b16 %v1330
    %v1368 = vunpack.c.l.b16 %v1331
    %v1369 = vunpack.c.l.b16 %v1332
    %v1370 = vunpack.c.l.b16 %v1333
    %v1371 = vunpack.c.l.b16 %v1334
    %v1372 = vunpack.c.l.b16 %v1335
    %v1373 = vpack.c.b16 %v1358, %v1357
    %v1374 = vpack.c.b16 %v1360, %v1359
    %v1375 = vpack.c.b16 %v1362, %v1361
    %v1376 = vpack.c.b16 %v1364, %v1363
    %v1377 = vpack.c.b16 %v1366, %v1365
    %v1378 = vpack.c.b16 %v1368, %v1367
    %v1379 = vpack.c.b16 %v1370, %v1369
    %v1380 = vpack.c.b16 %v1372, %v1371
    %1389 = vmatprep.subr.bf16.mxu0 0
    %1390 = vmatpush1.bf16.msra.mxu0 %v1380
    %1391 = vmatprep.subr.bf16.mxu0 0
    %1392 = vmatpush1.bf16.msra.mxu0 %v1379
    %1393 = vmatprep.subr.bf16.mxu0 0
    %1394 = vmatpush1.bf16.msra.mxu0 %v1378
    %1395 = vmatprep.subr.bf16.mxu0 0
    %1396 = vmatpush1.bf16.msra.mxu0 %v1377
    %1397 = vmatprep.subr.bf16.mxu0 0
    %1398 = vmatpush1.bf16.msra.mxu0 %v1376
    %1399 = vmatprep.subr.bf16.mxu0 0
    %1400 = vmatpush1.bf16.msra.mxu0 %v1375
    %1401 = vmatprep.subr.bf16.mxu0 0
    %1402 = vmatpush1.bf16.msra.mxu0 %v1374
    %1403 = vmatprep.subr.bf16.mxu0 0
    %1404 = vmatpush1.bf16.msra.mxu0 %v1373
    %1405 = vmatprep.subr.bf16.mxu0 0
    %1406 = vmatpush2.bf16.msra.mxu0 0
    %1407 = vmatprep.subr.bf16.mxu0 0
    %1408 = vmatpush2.bf16.msra.mxu0 0
    %1409 = vmatprep.subr.bf16.mxu0 0
    %1410 = vmatpush2.bf16.msra.mxu0 0
    %1411 = vmatprep.subr.bf16.mxu0 0
    %1412 = vmatpush2.bf16.msra.mxu0 0
    %1413 = vmatprep.subr.bf16.mxu0 0
    %1414 = vmatpush2.bf16.msra.mxu0 0
    %1415 = vmatprep.subr.bf16.mxu0 0
    %1416 = vmatpush2.bf16.msra.mxu0 0
    %1417 = vmatprep.subr.bf16.mxu0 0
    %1418 = vmatpush2.bf16.msra.mxu0 0
    %1419 = vmatprep.subr.bf16.mxu0 0
    %1420 = vmatpush2.bf16.msra.mxu0 0
    %1421 = vmatprep.mubr.bf16.mxu0 0
    %1422 = vmatmul.mubr.bf16.gmra.mxu0 %v1336
    %v1423 = vpop.f32.mrf.mxu0
    %v1424 = vadd.f32 %v1340, %v1423
    %v1425 = vpop.f32.mrf.mxu0
    %v1426 = vpop.f32.mrf.mxu0
    %v1427 = vadd.f32 %v1340, %v1426
    %v1428 = vpop.f32.mrf.mxu0
    %1429 = vdwg.mxu0
    %s1430 = scalar_lea.vmem [#allocation10], 16
    %1431 = vst [vmem:[%s1430] sm:$0xff] %v1424
    %1432 = vst [vmem:[%s1430 + $0x8] sm:$0xff] %v1427
    %s1433 = scalar_lea.vmem [#allocation8], 16
    %v1434 = vld [vmem:[%s1433] sm:$0xff]
    %s1435 = scalar_lea.vmem [#allocation5], 128
    %v1436 = vld [vmem:[%s1435] sm:$0xf]
    %v1437 = vld [vmem:[%s1435 + $0x4] sm:$0xf]
    %v1438 = vld [vmem:[%s1435 + $0x8] sm:$0xf]
    %v1439 = vld [vmem:[%s1435 + $0xc] sm:$0xf]
    %v1440 = vld [vmem:[%s1435 + $0x10] sm:$0xf]
    %v1441 = vld [vmem:[%s1435 + $0x14] sm:$0xf]
    %v1442 = vld [vmem:[%s1435 + $0x18] sm:$0xf]
    %v1443 = vld [vmem:[%s1435 + $0x1c] sm:$0xf]
    %v1444 = vld [vmem:[%s1435 + $0x20] sm:$0xf]
    %v1445 = vld [vmem:[%s1435 + $0x24] sm:$0xf]
    %v1446 = vld [vmem:[%s1435 + $0x28] sm:$0xf]
    %v1447 = vld [vmem:[%s1435 + $0x2c] sm:$0xf]
    %v1448 = vld [vmem:[%s1435 + $0x30] sm:$0xf]
    %v1449 = vld [vmem:[%s1435 + $0x34] sm:$0xf]
    %v1450 = vld [vmem:[%s1435 + $0x38] sm:$0xf]
    %v1451 = vld [vmem:[%s1435 + $0x3c] sm:$0xf]
    %v1468 = vunpack.c.l.b16 %v1436
    %v1469 = vunpack.c.l.b16 %v1437
    %v1470 = vunpack.c.l.b16 %v1438
    %v1471 = vunpack.c.l.b16 %v1439
    %v1472 = vunpack.c.l.b16 %v1440
    %v1473 = vunpack.c.l.b16 %v1441
    %v1474 = vunpack.c.l.b16 %v1442
    %v1475 = vunpack.c.l.b16 %v1443
    %v1476 = vunpack.c.l.b16 %v1444
    %v1477 = vunpack.c.l.b16 %v1445
    %v1478 = vunpack.c.l.b16 %v1446
    %v1479 = vunpack.c.l.b16 %v1447
    %v1480 = vunpack.c.l.b16 %v1448
    %v1481 = vunpack.c.l.b16 %v1449
    %v1482 = vunpack.c.l.b16 %v1450
    %v1483 = vunpack.c.l.b16 %v1451
    %v1484 = vpack.c.b16 %v1469, %v1468
    %v1485 = vpack.c.b16 %v1471, %v1470
    %v1486 = vpack.c.b16 %v1473, %v1472
    %v1487 = vpack.c.b16 %v1475, %v1474
    %v1488 = vpack.c.b16 %v1477, %v1476
    %v1489 = vpack.c.b16 %v1479, %v1478
    %v1490 = vpack.c.b16 %v1481, %v1480
    %v1491 = vpack.c.b16 %v1483, %v1482
    %1500 = vmatprep.subr.bf16.mxu0 0
    %1501 = vmatpush1.bf16.msra.mxu0 %v1491
    %1502 = vmatprep.subr.bf16.mxu0 0
    %1503 = vmatpush1.bf16.msra.mxu0 %v1490
    %1504 = vmatprep.subr.bf16.mxu0 0
    %1505 = vmatpush1.bf16.msra.mxu0 %v1489
    %1506 = vmatprep.subr.bf16.mxu0 0
    %1507 = vmatpush1.bf16.msra.mxu0 %v1488
    %1508 = vmatprep.subr.bf16.mxu0 0
    %1509 = vmatpush1.bf16.msra.mxu0 %v1487
    %1510 = vmatprep.subr.bf16.mxu0 0
    %1511 = vmatpush1.bf16.msra.mxu0 %v1486
    %1512 = vmatprep.subr.bf16.mxu0 0
    %1513 = vmatpush1.bf16.msra.mxu0 %v1485
    %1514 = vmatprep.subr.bf16.mxu0 0
    %1515 = vmatpush1.bf16.msra.mxu0 %v1484
    %1516 = vmatprep.subr.bf16.mxu0 0
    %1517 = vmatpush2.bf16.msra.mxu0 0
    %1518 = vmatprep.subr.bf16.mxu0 0
    %1519 = vmatpush2.bf16.msra.mxu0 0
    %1520 = vmatprep.subr.bf16.mxu0 0
    %1521 = vmatpush2.bf16.msra.mxu0 0
    %1522 = vmatprep.subr.bf16.mxu0 0
    %1523 = vmatpush2.bf16.msra.mxu0 0
    %1524 = vmatprep.subr.bf16.mxu0 0
    %1525 = vmatpush2.bf16.msra.mxu0 0
    %1526 = vmatprep.subr.bf16.mxu0 0
    %1527 = vmatpush2.bf16.msra.mxu0 0
    %1528 = vmatprep.subr.bf16.mxu0 0
    %1529 = vmatpush2.bf16.msra.mxu0 0
    %1530 = vmatprep.subr.bf16.mxu0 0
    %1531 = vmatpush2.bf16.msra.mxu0 0
    %1532 = vmatprep.mubr.bf16.mxu0 0
    %1533 = vmatmul.mubr.bf16.gmra.mxu0 %v97
    %v1534 = vpop.f32.mrf.mxu0
    %v1535 = vadd.f32 0.0, %v1534
    %v1536 = vpop.f32.mrf.mxu0
    %v1537 = vpop.f32.mrf.mxu0
    %v1538 = vadd.f32 0.0, %v1537
    %v1539 = vpop.f32.mrf.mxu0
    %1540 = vdwg.mxu0
    %1541 = vadd.xlane.f32.xlu0 %v1535
    %v1542 = vpop.xlane.xlu0 %1541
    %1543 = vadd.xlane.f32.xlu0 %v1538
    %v1544 = vpop.xlane.xlu0 %1543
    %v1545 = vmul.f32 %v1542, %v192
    %v1546 = vmul.f32 %v1544, %v192
    %v1547 = vmul.f32 %v1535, %v1535
    %v1548 = vmul.f32 %v1538, %v1538
    %1549 = vadd.xlane.f32.xlu0 %v1547
    %v1550 = vpop.xlane.xlu0 %1549
    %1551 = vadd.xlane.f32.xlu0 %v1548
    %v1552 = vpop.xlane.xlu0 %1551
    %v1553 = vmul.f32 %v1550, %v192
    %v1554 = vmul.f32 %v1552, %v192
    %v1555 = vmul.f32 %v1545, %v1545
    %v1556 = vmul.f32 %v1546, %v1546
    %v1557 = vsub.f32 %v1553, %v1555
    %v1558 = vsub.f32 %v1554, %v1556
    %v1559 = vmax.f32 %v1557, 0.0
    %v1560 = vmax.f32 %v1558, 0.0
    %v1561 = vadd.f32 %v1559, 1e-05
    %v1562 = vadd.f32 %v1560, 1e-05
    %v1563 = vrsqrt.pop %v1561
    %v1564 = vrsqrt.pop %v1562
    %v1565 = vsub.f32 %v1535, %v1545
    %v1566 = vsub.f32 %v1538, %v1546
    %v1567 = vmul.f32 %v1565, %v1563
    %v1568 = vmul.f32 %v1566, %v1564
    %v1569 = vlaneseq
    %v1570 = vshrl.u32 %v1569, 7
    %v1571 = vsub.s32 0, %v1570
    %v1572 = vrot.slane %v1434, %v1571
    %v1573 = vmul.f32 %v1567, %v1572
    %v1574 = vmul.f32 %v1568, %v1572
    %v1575 = vlaneseq
    %v1576 = vshrl.u32 %v1575, 7
    %v1577 = vsub.s32 1, %v1576
    %v1578 = vrot.slane %v1434, %v1577
    %v1579 = vadd.f32 %v1573, %v1578
    %v1580 = vadd.f32 %v1574, %v1578
    %v1581 = vmax.f32 %v1579, 0.0
    %v1582 = vmax.f32 %v1580, 0.0
    %s1583 = scalar_lea.vmem [#allocation7], 512
    %v1584 = vld [vmem:[%s1583] sm:$0xf]
    %v1585 = vld [vmem:[%s1583 + $0x4] sm:$0xf]
    %v1586 = vld [vmem:[%s1583 + $0x8] sm:$0xf]
    %v1587 = vld [vmem:[%s1583 + $0xc] sm:$0xf]
    %v1588 = vld [vmem:[%s1583 + $0x10] sm:$0xf]
    %v1589 = vld [vmem:[%s1583 + $0x14] sm:$0xf]
    %v1590 = vld [vmem:[%s1583 + $0x18] sm:$0xf]
    %v1591 = vld [vmem:[%s1583 + $0x1c] sm:$0xf]
    %v1592 = vld [vmem:[%s1583 + $0x20] sm:$0xf]
    %v1593 = vld [vmem:[%s1583 + $0x24] sm:$0xf]
    %v1594 = vld [vmem:[%s1583 + $0x28] sm:$0xf]
    %v1595 = vld [vmem:[%s1583 + $0x2c] sm:$0xf]
    %v1596 = vld [vmem:[%s1583 + $0x30] sm:$0xf]
    %v1597 = vld [vmem:[%s1583 + $0x34] sm:$0xf]
    %v1598 = vld [vmem:[%s1583 + $0x38] sm:$0xf]
    %v1599 = vld [vmem:[%s1583 + $0x3c] sm:$0xf]
    %v1600 = vpack.c.bf16 %v1582, %v1581
    %v1617 = vunpack.c.l.b16 %v1584
    %v1618 = vunpack.c.l.b16 %v1585
    %v1619 = vunpack.c.l.b16 %v1586
    %v1620 = vunpack.c.l.b16 %v1587
    %v1621 = vunpack.c.l.b16 %v1588
    %v1622 = vunpack.c.l.b16 %v1589
    %v1623 = vunpack.c.l.b16 %v1590
    %v1624 = vunpack.c.l.b16 %v1591
    %v1625 = vunpack.c.l.b16 %v1592
    %v1626 = vunpack.c.l.b16 %v1593
    %v1627 = vunpack.c.l.b16 %v1594
    %v1628 = vunpack.c.l.b16 %v1595
    %v1629 = vunpack.c.l.b16 %v1596
    %v1630 = vunpack.c.l.b16 %v1597
    %v1631 = vunpack.c.l.b16 %v1598
    %v1632 = vunpack.c.l.b16 %v1599
    %v1633 = vpack.c.b16 %v1618, %v1617
    %v1634 = vpack.c.b16 %v1620, %v1619
    %v1635 = vpack.c.b16 %v1622, %v1621
    %v1636 = vpack.c.b16 %v1624, %v1623
    %v1637 = vpack.c.b16 %v1626, %v1625
    %v1638 = vpack.c.b16 %v1628, %v1627
    %v1639 = vpack.c.b16 %v1630, %v1629
    %v1640 = vpack.c.b16 %v1632, %v1631
    %1649 = vmatprep.subr.bf16.mxu0 0
    %1650 = vmatpush1.bf16.msra.mxu0 %v1640
    %1651 = vmatprep.subr.bf16.mxu0 0
    %1652 = vmatpush1.bf16.msra.mxu0 %v1639
    %1653 = vmatprep.subr.bf16.mxu0 0
    %1654 = vmatpush1.bf16.msra.mxu0 %v1638
    %1655 = vmatprep.subr.bf16.mxu0 0
    %1656 = vmatpush1.bf16.msra.mxu0 %v1637
    %1657 = vmatprep.subr.bf16.mxu0 0
    %1658 = vmatpush1.bf16.msra.mxu0 %v1636
    %1659 = vmatprep.subr.bf16.mxu0 0
    %1660 = vmatpush1.bf16.msra.mxu0 %v1635
    %1661 = vmatprep.subr.bf16.mxu0 0
    %1662 = vmatpush1.bf16.msra.mxu0 %v1634
    %1663 = vmatprep.subr.bf16.mxu0 0
    %1664 = vmatpush1.bf16.msra.mxu0 %v1633
    %1665 = vmatprep.subr.bf16.mxu0 0
    %1666 = vmatpush2.bf16.msra.mxu0 0
    %1667 = vmatprep.subr.bf16.mxu0 0
    %1668 = vmatpush2.bf16.msra.mxu0 0
    %1669 = vmatprep.subr.bf16.mxu0 0
    %1670 = vmatpush2.bf16.msra.mxu0 0
    %1671 = vmatprep.subr.bf16.mxu0 0
    %1672 = vmatpush2.bf16.msra.mxu0 0
    %1673 = vmatprep.subr.bf16.mxu0 0
    %1674 = vmatpush2.bf16.msra.mxu0 0
    %1675 = vmatprep.subr.bf16.mxu0 0
    %1676 = vmatpush2.bf16.msra.mxu0 0
    %1677 = vmatprep.subr.bf16.mxu0 0
    %1678 = vmatpush2.bf16.msra.mxu0 0
    %1679 = vmatprep.subr.bf16.mxu0 0
    %1680 = vmatpush2.bf16.msra.mxu0 0
    %1681 = vmatprep.mubr.bf16.mxu0 0
    %1682 = vmatmul.mubr.bf16.gmra.mxu0 %v1600
    %v1683 = vpop.f32.mrf.mxu0
    %v1684 = vadd.f32 0.0, %v1683
    %v1685 = vpop.f32.mrf.mxu0
    %v1686 = vpop.f32.mrf.mxu0
    %v1687 = vadd.f32 0.0, %v1686
    %v1688 = vpop.f32.mrf.mxu0
    %1689 = vdwg.mxu0
    %1690 = vadd.xlane.f32.xlu0 %v1684
    %v1691 = vpop.xlane.xlu0 %1690
    %1692 = vadd.xlane.f32.xlu0 %v1687
    %v1693 = vpop.xlane.xlu0 %1692
    %v1694 = vmul.f32 %v1691, %v192
    %v1695 = vmul.f32 %v1693, %v192
    %v1696 = vmul.f32 %v1684, %v1684
    %v1697 = vmul.f32 %v1687, %v1687
    %1698 = vadd.xlane.f32.xlu0 %v1696
    %v1699 = vpop.xlane.xlu0 %1698
    %1700 = vadd.xlane.f32.xlu0 %v1697
    %v1701 = vpop.xlane.xlu0 %1700
    %v1702 = vmul.f32 %v1699, %v192
    %v1703 = vmul.f32 %v1701, %v192
    %v1704 = vmul.f32 %v1694, %v1694
    %v1705 = vmul.f32 %v1695, %v1695
    %v1706 = vsub.f32 %v1702, %v1704
    %v1707 = vsub.f32 %v1703, %v1705
    %v1708 = vmax.f32 %v1706, 0.0
    %v1709 = vmax.f32 %v1707, 0.0
    %v1710 = vadd.f32 %v1708, 1e-05
    %v1711 = vadd.f32 %v1709, 1e-05
    %v1712 = vrsqrt.pop %v1710
    %v1713 = vrsqrt.pop %v1711
    %v1714 = vsub.f32 %v1684, %v1694
    %v1715 = vsub.f32 %v1687, %v1695
    %v1716 = vmul.f32 %v1714, %v1712
    %v1717 = vmul.f32 %v1715, %v1713
    %v1718 = vlaneseq
    %v1719 = vshrl.u32 %v1718, 7
    %v1720 = vsub.s32 2, %v1719
    %v1721 = vrot.slane %v1434, %v1720
    %v1722 = vmul.f32 %v1716, %v1721
    %v1723 = vmul.f32 %v1717, %v1721
    %v1724 = vlaneseq
    %v1725 = vshrl.u32 %v1724, 7
    %v1726 = vsub.s32 4, %v1725
    %v1727 = vrot.slane %v1434, %v1726
    %v1728 = vadd.f32 %v1722, %v1727
    %v1729 = vadd.f32 %v1723, %v1727
    %v1730 = vmax.f32 %v1728, 0.0
    %v1731 = vmax.f32 %v1729, 0.0
    %v1732 = vadd.f32 %v1730, %v1581
    %v1733 = vadd.f32 %v1731, %v1582
    %s1734 = scalar_lea.vmem [#allocation7], 576
    %v1735 = vld [vmem:[%s1734] sm:$0xf]
    %v1736 = vld [vmem:[%s1734 + $0x4] sm:$0xf]
    %v1737 = vld [vmem:[%s1734 + $0x8] sm:$0xf]
    %v1738 = vld [vmem:[%s1734 + $0xc] sm:$0xf]
    %v1739 = vld [vmem:[%s1734 + $0x10] sm:$0xf]
    %v1740 = vld [vmem:[%s1734 + $0x14] sm:$0xf]
    %v1741 = vld [vmem:[%s1734 + $0x18] sm:$0xf]
    %v1742 = vld [vmem:[%s1734 + $0x1c] sm:$0xf]
    %v1743 = vld [vmem:[%s1734 + $0x20] sm:$0xf]
    %v1744 = vld [vmem:[%s1734 + $0x24] sm:$0xf]
    %v1745 = vld [vmem:[%s1734 + $0x28] sm:$0xf]
    %v1746 = vld [vmem:[%s1734 + $0x2c] sm:$0xf]
    %v1747 = vld [vmem:[%s1734 + $0x30] sm:$0xf]
    %v1748 = vld [vmem:[%s1734 + $0x34] sm:$0xf]
    %v1749 = vld [vmem:[%s1734 + $0x38] sm:$0xf]
    %v1750 = vld [vmem:[%s1734 + $0x3c] sm:$0xf]
    %v1751 = vpack.c.bf16 %v1733, %v1732
    %v1768 = vunpack.c.l.b16 %v1735
    %v1769 = vunpack.c.l.b16 %v1736
    %v1770 = vunpack.c.l.b16 %v1737
    %v1771 = vunpack.c.l.b16 %v1738
    %v1772 = vunpack.c.l.b16 %v1739
    %v1773 = vunpack.c.l.b16 %v1740
    %v1774 = vunpack.c.l.b16 %v1741
    %v1775 = vunpack.c.l.b16 %v1742
    %v1776 = vunpack.c.l.b16 %v1743
    %v1777 = vunpack.c.l.b16 %v1744
    %v1778 = vunpack.c.l.b16 %v1745
    %v1779 = vunpack.c.l.b16 %v1746
    %v1780 = vunpack.c.l.b16 %v1747
    %v1781 = vunpack.c.l.b16 %v1748
    %v1782 = vunpack.c.l.b16 %v1749
    %v1783 = vunpack.c.l.b16 %v1750
    %v1784 = vpack.c.b16 %v1769, %v1768
    %v1785 = vpack.c.b16 %v1771, %v1770
    %v1786 = vpack.c.b16 %v1773, %v1772
    %v1787 = vpack.c.b16 %v1775, %v1774
    %v1788 = vpack.c.b16 %v1777, %v1776
    %v1789 = vpack.c.b16 %v1779, %v1778
    %v1790 = vpack.c.b16 %v1781, %v1780
    %v1791 = vpack.c.b16 %v1783, %v1782
    %1800 = vmatprep.subr.bf16.mxu0 0
    %1801 = vmatpush1.bf16.msra.mxu0 %v1791
    %1802 = vmatprep.subr.bf16.mxu0 0
    %1803 = vmatpush1.bf16.msra.mxu0 %v1790
    %1804 = vmatprep.subr.bf16.mxu0 0
    %1805 = vmatpush1.bf16.msra.mxu0 %v1789
    %1806 = vmatprep.subr.bf16.mxu0 0
    %1807 = vmatpush1.bf16.msra.mxu0 %v1788
    %1808 = vmatprep.subr.bf16.mxu0 0
    %1809 = vmatpush1.bf16.msra.mxu0 %v1787
    %1810 = vmatprep.subr.bf16.mxu0 0
    %1811 = vmatpush1.bf16.msra.mxu0 %v1786
    %1812 = vmatprep.subr.bf16.mxu0 0
    %1813 = vmatpush1.bf16.msra.mxu0 %v1785
    %1814 = vmatprep.subr.bf16.mxu0 0
    %1815 = vmatpush1.bf16.msra.mxu0 %v1784
    %1816 = vmatprep.subr.bf16.mxu0 0
    %1817 = vmatpush2.bf16.msra.mxu0 0
    %1818 = vmatprep.subr.bf16.mxu0 0
    %1819 = vmatpush2.bf16.msra.mxu0 0
    %1820 = vmatprep.subr.bf16.mxu0 0
    %1821 = vmatpush2.bf16.msra.mxu0 0
    %1822 = vmatprep.subr.bf16.mxu0 0
    %1823 = vmatpush2.bf16.msra.mxu0 0
    %1824 = vmatprep.subr.bf16.mxu0 0
    %1825 = vmatpush2.bf16.msra.mxu0 0
    %1826 = vmatprep.subr.bf16.mxu0 0
    %1827 = vmatpush2.bf16.msra.mxu0 0
    %1828 = vmatprep.subr.bf16.mxu0 0
    %1829 = vmatpush2.bf16.msra.mxu0 0
    %1830 = vmatprep.subr.bf16.mxu0 0
    %1831 = vmatpush2.bf16.msra.mxu0 0
    %1832 = vmatprep.mubr.bf16.mxu0 0
    %1833 = vmatmul.mubr.bf16.gmra.mxu0 %v1751
    %v1834 = vpop.f32.mrf.mxu0
    %v1835 = vadd.f32 0.0, %v1834
    %v1836 = vpop.f32.mrf.mxu0
    %v1837 = vpop.f32.mrf.mxu0
    %v1838 = vadd.f32 0.0, %v1837
    %v1839 = vpop.f32.mrf.mxu0
    %1840 = vdwg.mxu0
    %1841 = vadd.xlane.f32.xlu0 %v1835
    %v1842 = vpop.xlane.xlu0 %1841
    %1843 = vadd.xlane.f32.xlu0 %v1838
    %v1844 = vpop.xlane.xlu0 %1843
    %v1845 = vmul.f32 %v1842, %v192
    %v1846 = vmul.f32 %v1844, %v192
    %v1847 = vmul.f32 %v1835, %v1835
    %v1848 = vmul.f32 %v1838, %v1838
    %1849 = vadd.xlane.f32.xlu0 %v1847
    %v1850 = vpop.xlane.xlu0 %1849
    %1851 = vadd.xlane.f32.xlu0 %v1848
    %v1852 = vpop.xlane.xlu0 %1851
    %v1853 = vmul.f32 %v1850, %v192
    %v1854 = vmul.f32 %v1852, %v192
    %v1855 = vmul.f32 %v1845, %v1845
    %v1856 = vmul.f32 %v1846, %v1846
    %v1857 = vsub.f32 %v1853, %v1855
    %v1858 = vsub.f32 %v1854, %v1856
    %v1859 = vmax.f32 %v1857, 0.0
    %v1860 = vmax.f32 %v1858, 0.0
    %v1861 = vadd.f32 %v1859, 1e-05
    %v1862 = vadd.f32 %v1860, 1e-05
    %v1863 = vrsqrt.pop %v1861
    %v1864 = vrsqrt.pop %v1862
    %v1865 = vsub.f32 %v1835, %v1845
    %v1866 = vsub.f32 %v1838, %v1846
    %v1867 = vmul.f32 %v1865, %v1863
    %v1868 = vmul.f32 %v1866, %v1864
    %v1869 = vlaneseq
    %v1870 = vshrl.u32 %v1869, 7
    %v1871 = vsub.s32 3, %v1870
    %v1872 = vrot.slane %v1434, %v1871
    %v1873 = vmul.f32 %v1867, %v1872
    %v1874 = vmul.f32 %v1868, %v1872
    %v1875 = vlaneseq
    %v1876 = vshrl.u32 %v1875, 7
    %v1877 = vsub.s32 5, %v1876
    %v1878 = vrot.slane %v1434, %v1877
    %v1879 = vadd.f32 %v1873, %v1878
    %v1880 = vadd.f32 %v1874, %v1878
    %v1881 = vmax.f32 %v1879, 0.0
    %v1882 = vmax.f32 %v1880, 0.0
    %v1883 = vadd.f32 %v1881, %v1732
    %v1884 = vadd.f32 %v1882, %v1733
    %s1885 = scalar_lea.vmem [#allocation7], 640
    %v1886 = vld [vmem:[%s1885] sm:$0xf]
    %v1887 = vld [vmem:[%s1885 + $0x4] sm:$0xf]
    %v1888 = vld [vmem:[%s1885 + $0x8] sm:$0xf]
    %v1889 = vld [vmem:[%s1885 + $0xc] sm:$0xf]
    %v1890 = vld [vmem:[%s1885 + $0x10] sm:$0xf]
    %v1891 = vld [vmem:[%s1885 + $0x14] sm:$0xf]
    %v1892 = vld [vmem:[%s1885 + $0x18] sm:$0xf]
    %v1893 = vld [vmem:[%s1885 + $0x1c] sm:$0xf]
    %v1894 = vld [vmem:[%s1885 + $0x20] sm:$0xf]
    %v1895 = vld [vmem:[%s1885 + $0x24] sm:$0xf]
    %v1896 = vld [vmem:[%s1885 + $0x28] sm:$0xf]
    %v1897 = vld [vmem:[%s1885 + $0x2c] sm:$0xf]
    %v1898 = vld [vmem:[%s1885 + $0x30] sm:$0xf]
    %v1899 = vld [vmem:[%s1885 + $0x34] sm:$0xf]
    %v1900 = vld [vmem:[%s1885 + $0x38] sm:$0xf]
    %v1901 = vld [vmem:[%s1885 + $0x3c] sm:$0xf]
    %v1902 = vpack.c.bf16 %v1884, %v1883
    %v1903 = vlaneseq
    %v1904 = vshrl.u32 %v1903, 7
    %v1905 = vsub.s32 6, %v1904
    %v1906 = vrot.slane %v1434, %v1905
    %v1923 = vunpack.c.l.b16 %v1886
    %v1924 = vunpack.c.l.b16 %v1887
    %v1925 = vunpack.c.l.b16 %v1888
    %v1926 = vunpack.c.l.b16 %v1889
    %v1927 = vunpack.c.l.b16 %v1890
    %v1928 = vunpack.c.l.b16 %v1891
    %v1929 = vunpack.c.l.b16 %v1892
    %v1930 = vunpack.c.l.b16 %v1893
    %v1931 = vunpack.c.l.b16 %v1894
    %v1932 = vunpack.c.l.b16 %v1895
    %v1933 = vunpack.c.l.b16 %v1896
    %v1934 = vunpack.c.l.b16 %v1897
    %v1935 = vunpack.c.l.b16 %v1898
    %v1936 = vunpack.c.l.b16 %v1899
    %v1937 = vunpack.c.l.b16 %v1900
    %v1938 = vunpack.c.l.b16 %v1901
    %v1939 = vpack.c.b16 %v1924, %v1923
    %v1940 = vpack.c.b16 %v1926, %v1925
    %v1941 = vpack.c.b16 %v1928, %v1927
    %v1942 = vpack.c.b16 %v1930, %v1929
    %v1943 = vpack.c.b16 %v1932, %v1931
    %v1944 = vpack.c.b16 %v1934, %v1933
    %v1945 = vpack.c.b16 %v1936, %v1935
    %v1946 = vpack.c.b16 %v1938, %v1937
    %1955 = vmatprep.subr.bf16.mxu0 0
    %1956 = vmatpush1.bf16.msra.mxu0 %v1946
    %1957 = vmatprep.subr.bf16.mxu0 0
    %1958 = vmatpush1.bf16.msra.mxu0 %v1945
    %1959 = vmatprep.subr.bf16.mxu0 0
    %1960 = vmatpush1.bf16.msra.mxu0 %v1944
    %1961 = vmatprep.subr.bf16.mxu0 0
    %1962 = vmatpush1.bf16.msra.mxu0 %v1943
    %1963 = vmatprep.subr.bf16.mxu0 0
    %1964 = vmatpush1.bf16.msra.mxu0 %v1942
    %1965 = vmatprep.subr.bf16.mxu0 0
    %1966 = vmatpush1.bf16.msra.mxu0 %v1941
    %1967 = vmatprep.subr.bf16.mxu0 0
    %1968 = vmatpush1.bf16.msra.mxu0 %v1940
    %1969 = vmatprep.subr.bf16.mxu0 0
    %1970 = vmatpush1.bf16.msra.mxu0 %v1939
    %1971 = vmatprep.subr.bf16.mxu0 0
    %1972 = vmatpush2.bf16.msra.mxu0 0
    %1973 = vmatprep.subr.bf16.mxu0 0
    %1974 = vmatpush2.bf16.msra.mxu0 0
    %1975 = vmatprep.subr.bf16.mxu0 0
    %1976 = vmatpush2.bf16.msra.mxu0 0
    %1977 = vmatprep.subr.bf16.mxu0 0
    %1978 = vmatpush2.bf16.msra.mxu0 0
    %1979 = vmatprep.subr.bf16.mxu0 0
    %1980 = vmatpush2.bf16.msra.mxu0 0
    %1981 = vmatprep.subr.bf16.mxu0 0
    %1982 = vmatpush2.bf16.msra.mxu0 0
    %1983 = vmatprep.subr.bf16.mxu0 0
    %1984 = vmatpush2.bf16.msra.mxu0 0
    %1985 = vmatprep.subr.bf16.mxu0 0
    %1986 = vmatpush2.bf16.msra.mxu0 0
    %1987 = vmatprep.mubr.bf16.mxu0 0
    %1988 = vmatmul.mubr.bf16.gmra.mxu0 %v1902
    %v1989 = vpop.f32.mrf.mxu0
    %v1990 = vadd.f32 %v1906, %v1989
    %v1991 = vpop.f32.mrf.mxu0
    %v1992 = vpop.f32.mrf.mxu0
    %v1993 = vadd.f32 %v1906, %v1992
    %v1994 = vpop.f32.mrf.mxu0
    %1995 = vdwg.mxu0
    %s1996 = scalar_lea.vmem [#allocation7], 704
    %v1997 = vld [vmem:[%s1996] sm:$0xf]
    %v1998 = vld [vmem:[%s1996 + $0x4] sm:$0xf]
    %v1999 = vld [vmem:[%s1996 + $0x8] sm:$0xf]
    %v2000 = vld [vmem:[%s1996 + $0xc] sm:$0xf]
    %v2001 = vld [vmem:[%s1996 + $0x10] sm:$0xf]
    %v2002 = vld [vmem:[%s1996 + $0x14] sm:$0xf]
    %v2003 = vld [vmem:[%s1996 + $0x18] sm:$0xf]
    %v2004 = vld [vmem:[%s1996 + $0x1c] sm:$0xf]
    %v2005 = vld [vmem:[%s1996 + $0x20] sm:$0xf]
    %v2006 = vld [vmem:[%s1996 + $0x24] sm:$0xf]
    %v2007 = vld [vmem:[%s1996 + $0x28] sm:$0xf]
    %v2008 = vld [vmem:[%s1996 + $0x2c] sm:$0xf]
    %v2009 = vld [vmem:[%s1996 + $0x30] sm:$0xf]
    %v2010 = vld [vmem:[%s1996 + $0x34] sm:$0xf]
    %v2011 = vld [vmem:[%s1996 + $0x38] sm:$0xf]
    %v2012 = vld [vmem:[%s1996 + $0x3c] sm:$0xf]
    %v2013 = vpack.c.bf16 %v1993, %v1990
    %v2014 = vlaneseq
    %v2015 = vshrl.u32 %v2014, 7
    %v2016 = vsub.s32 7, %v2015
    %v2017 = vrot.slane %v1434, %v2016
    %v2034 = vunpack.c.l.b16 %v1997
    %v2035 = vunpack.c.l.b16 %v1998
    %v2036 = vunpack.c.l.b16 %v1999
    %v2037 = vunpack.c.l.b16 %v2000
    %v2038 = vunpack.c.l.b16 %v2001
    %v2039 = vunpack.c.l.b16 %v2002
    %v2040 = vunpack.c.l.b16 %v2003
    %v2041 = vunpack.c.l.b16 %v2004
    %v2042 = vunpack.c.l.b16 %v2005
    %v2043 = vunpack.c.l.b16 %v2006
    %v2044 = vunpack.c.l.b16 %v2007
    %v2045 = vunpack.c.l.b16 %v2008
    %v2046 = vunpack.c.l.b16 %v2009
    %v2047 = vunpack.c.l.b16 %v2010
    %v2048 = vunpack.c.l.b16 %v2011
    %v2049 = vunpack.c.l.b16 %v2012
    %v2050 = vpack.c.b16 %v2035, %v2034
    %v2051 = vpack.c.b16 %v2037, %v2036
    %v2052 = vpack.c.b16 %v2039, %v2038
    %v2053 = vpack.c.b16 %v2041, %v2040
    %v2054 = vpack.c.b16 %v2043, %v2042
    %v2055 = vpack.c.b16 %v2045, %v2044
    %v2056 = vpack.c.b16 %v2047, %v2046
    %v2057 = vpack.c.b16 %v2049, %v2048
    %2066 = vmatprep.subr.bf16.mxu0 0
    %2067 = vmatpush1.bf16.msra.mxu0 %v2057
    %2068 = vmatprep.subr.bf16.mxu0 0
    %2069 = vmatpush1.bf16.msra.mxu0 %v2056
    %2070 = vmatprep.subr.bf16.mxu0 0
    %2071 = vmatpush1.bf16.msra.mxu0 %v2055
    %2072 = vmatprep.subr.bf16.mxu0 0
    %2073 = vmatpush1.bf16.msra.mxu0 %v2054
    %2074 = vmatprep.subr.bf16.mxu0 0
    %2075 = vmatpush1.bf16.msra.mxu0 %v2053
    %2076 = vmatprep.subr.bf16.mxu0 0
    %2077 = vmatpush1.bf16.msra.mxu0 %v2052
    %2078 = vmatprep.subr.bf16.mxu0 0
    %2079 = vmatpush1.bf16.msra.mxu0 %v2051
    %2080 = vmatprep.subr.bf16.mxu0 0
    %2081 = vmatpush1.bf16.msra.mxu0 %v2050
    %2082 = vmatprep.subr.bf16.mxu0 0
    %2083 = vmatpush2.bf16.msra.mxu0 0
    %2084 = vmatprep.subr.bf16.mxu0 0
    %2085 = vmatpush2.bf16.msra.mxu0 0
    %2086 = vmatprep.subr.bf16.mxu0 0
    %2087 = vmatpush2.bf16.msra.mxu0 0
    %2088 = vmatprep.subr.bf16.mxu0 0
    %2089 = vmatpush2.bf16.msra.mxu0 0
    %2090 = vmatprep.subr.bf16.mxu0 0
    %2091 = vmatpush2.bf16.msra.mxu0 0
    %2092 = vmatprep.subr.bf16.mxu0 0
    %2093 = vmatpush2.bf16.msra.mxu0 0
    %2094 = vmatprep.subr.bf16.mxu0 0
    %2095 = vmatpush2.bf16.msra.mxu0 0
    %2096 = vmatprep.subr.bf16.mxu0 0
    %2097 = vmatpush2.bf16.msra.mxu0 0
    %2098 = vmatprep.mubr.bf16.mxu0 0
    %2099 = vmatmul.mubr.bf16.gmra.mxu0 %v2013
    %v2100 = vpop.f32.mrf.mxu0
    %v2101 = vadd.f32 %v2017, %v2100
    %v2102 = vpop.f32.mrf.mxu0
    %v2103 = vpop.f32.mrf.mxu0
    %v2104 = vadd.f32 %v2017, %v2103
    %v2105 = vpop.f32.mrf.mxu0
    %2106 = vdwg.mxu0
    %s2107 = scalar_lea.vmem [#allocation10], 32
    %2108 = vst [vmem:[%s2107] sm:$0xff] %v2101
    %2109 = vst [vmem:[%s2107 + $0x8] sm:$0xff] %v2104
    // Predicated region
    $region34: #{tpu_custom_call.1} parent=1 // pred_check
      _
    $region35: #{tpu_custom_call.1} parent=1 // pred_check_branch
      %2111 = sbr.rel (0) target = $region37
    $region36: #{tpu_custom_call.1} parent=1 // pred_region
      %s2113 = ssub.s32 768, 768
      %2114 = vsyncadd [#allocation4], %s2113
      %s2115 = sshll.u32 [#allocation10], 4
      %s2116 = int_to_ptr.vmem [resolvable:$true] %s2115
      %2121 = dma.vmem_to_hbm [thread:$0]  %s2116, 768, %s4, [#allocation4], 128, 128, 8
    $region37: #{tpu_custom_call.1} parent=1 // pred_fallthru
      _
    // Predicated region
    $region38: #{tpu_custom_call.1} parent=1 // pred_check
      _
    $region39: #{tpu_custom_call.1} parent=1 // pred_check_branch
      %2123 = sbr.rel (0) target = $region41
    $region40: #{tpu_custom_call.1} parent=1 // pred_region
      %2124 = dma.done [#allocation4], 768
    $region41: #{tpu_custom_call.1} parent=1 // pred_fallthru
      _
    %2125 = vsyncpa [#allocation3], 1
    %2126 = vsyncpa [#allocation6], 1
    %2127 = vsyncpa [#allocation9], 1
    %2128 = vsyncpa [#allocation4], 1

</llo_original>
